<compile_context>
chip_gen: v7x
topology: tpu7x:2x2x1
jax: 0.10.0
libtpu: 0.0.40
codegen_flags: <defaults>
</compile_context>

<pallas_src>
import jax
import jax.numpy as jnp
from jax import lax
from jax.experimental import pallas as pl
from jax.experimental.pallas import tpu as pltpu


def _round_up(x, m):
    return (x + m - 1) // m * m


def _vmem_ceiling_bytes():
    """Generation-aware scoped-VMEM ceiling (~48 MiB on v7x, ~112 MiB on v5e/v6e)."""
    cap = 64 << 20
    try:
        cap = int(getattr(pltpu.get_tpu_info(), "vmem_capacity_bytes", cap))
    except Exception:
        pass
    return max(min(cap - (16 << 20), 112 << 20), 24 << 20)


def _ncf_tail(eu, ei, w_refs, out_ref, n_hidden_layers, compute_dtype):
    """interaction (split W0) -> (Linear+ReLU)*n -> dist layer -> relu -> predict -> pack."""
    w0u = w_refs[0][...]
    w0i = w_refs[1][...]
    b0 = w_refs[2][...]
    # concat(eu, ei) @ W0 == eu @ W0_top + ei @ W0_bot  (concat eliminated).
    h = jnp.dot(eu.astype(compute_dtype), w0u, preferred_element_type=jnp.float32)
    h = h + jnp.dot(ei.astype(compute_dtype), w0i, preferred_element_type=jnp.float32)
    h = jnp.maximum(h + b0, 0.0)
    # TODO(synk): nn.Dropout is identity at eval/inference time; omitted.

    idx = 3
    for _ in range(n_hidden_layers - 1):
        w = w_refs[idx][...]
        b = w_refs[idx + 1][...]
        idx += 2
        h = jnp.maximum(
            jnp.dot(h.astype(compute_dtype), w, preferred_element_type=jnp.float32) + b,
            0.0)

    wd = w_refs[idx][...]          # (emb_dim, PAD)  zero-padded beyond dist_size
    bd = w_refs[idx + 1][...]      # (1, PAD)        zero-padded
    wp = w_refs[idx + 2][...]      # (1, PAD)        predict weight row, zero-padded
    bp = w_refs[idx + 3][...]      # (1, 1)
    onehot = w_refs[idx + 4][...]  # (1, PAD)        1.0 at lane dist_size, else 0

    # _forward_distribution_layer at lane-dense padded width.
    dist = jnp.dot(h.astype(compute_dtype), wd, preferred_element_type=jnp.float32) + bd
    probs = jnp.maximum(dist, 0.0)
    # predict_layer: width-1 matmul done as a cross-lane reduction (zero padding lanes
    # of wp contribute nothing).
    pred = jnp.sum(probs * wp, axis=-1, keepdims=True) + bp
    # Fold the prediction into spare lane `dist_size` of the slab: dist is 0 there
    # (wd_pad/bd_pad are zero), so one fused mul-add replaces iota/compare/select.
    out_ref[...] = (dist + pred * onehot).astype(out_ref.dtype)


def _make_fused_kernel(n_hidden_layers, compute_dtype, bt):
    """Kernel with in-kernel embedding gather (ids in SMEM, tables in HBM)."""

    def kernel(users_ref, items_ref, eu_hbm, ei_hbm, *refs):
        *w_refs, out_ref, eu_buf, ei_buf, sem = refs
        base = pl.program_id(0) * bt

        # Issue one row DMA per batch element of this tile (all copies same size).
        def issue(r, carry):
            pltpu.make_async_copy(eu_hbm.at[users_ref[base + r]],
                                  eu_buf.at[r], sem.at[0]).start()
            pltpu.make_async_copy(ei_hbm.at[items_ref[base + r]],
                                  ei_buf.at[r], sem.at[1]).start()
            return carry
        lax.fori_loop(0, bt, issue, 0)

        # Drain: bt same-sized waits per table retire all issued copies; using .at[r]
        # as the dst keeps the whole scratch buffer's dependence visible to the scheduler.
        def drain(r, carry):
            pltpu.make_async_copy(eu_hbm.at[0], eu_buf.at[r], sem.at[0]).wait()
            pltpu.make_async_copy(ei_hbm.at[0], ei_buf.at[r], sem.at[1]).wait()
            return carry
        lax.fori_loop(0, bt, drain, 0)

        _ncf_tail(eu_buf[...], ei_buf[...], w_refs, out_ref,
                  n_hidden_layers, compute_dtype)

    return kernel


def _make_streamed_kernel(n_hidden_layers, compute_dtype):
    """Fallback kernel: pre-gathered embeddings streamed per tile via BlockSpec."""

    def kernel(eu_ref, ei_ref, *refs):
        *w_refs, out_ref = refs
        _ncf_tail(eu_ref[...], ei_ref[...], w_refs, out_ref,
                  n_hidden_layers, compute_dtype)

    return kernel


def init_ncf_params(key, *, num_users, num_items, embedding_dimension,
                    n_hidden_layers, distribution_size):
    """Deterministic synthetic parameter init mirroring NCF._init_weight_."""
    keys = jax.random.split(key, 16)
    k = iter(keys)

    mlp_embed_dim = embedding_dimension * 2 ** (n_hidden_layers - 1)

    params = {}
    # Embeddings: normal(std=0.01)
    params["embed_user_MLP"] = 0.01 * jax.random.normal(
        next(k), (num_users, mlp_embed_dim), jnp.float32)
    params["embed_item_MLP"] = 0.01 * jax.random.normal(
        next(k), (num_items, mlp_embed_dim), jnp.float32)

    # MLP layers: Linear(ED * 2**(n-i), ED * 2**(n-i) // 2), xavier_uniform, zero bias.
    mlp = []
    for i in range(n_hidden_layers):
        in_size = embedding_dimension * 2 ** (n_hidden_layers - i)
        out_size = in_size // 2
        limit = (6.0 / (in_size + out_size)) ** 0.5
        w = jax.random.uniform(next(k), (in_size, out_size), jnp.float32,
                               minval=-limit, maxval=limit)
        b = jnp.zeros((1, out_size), jnp.float32)
        mlp.append((w, b))
    params["mlp"] = mlp

    # output_distribution_layer: Linear(embedding_dimension, distribution_size),
    # PyTorch default (kaiming_uniform a=sqrt(5)) -> bound = 1/sqrt(fan_in).
    fan_in = embedding_dimension
    bound = 1.0 / (fan_in ** 0.5)
    params["wd"] = jax.random.uniform(next(k), (embedding_dimension, distribution_size),
                                      jnp.float32, minval=-bound, maxval=bound)
    params["bd"] = jax.random.uniform(next(k), (1, distribution_size),
                                      jnp.float32, minval=-bound, maxval=bound)

    # predict_layer: Linear(distribution_size, 1), kaiming_uniform(a=1, 'sigmoid')
    # gain(sigmoid)=1 -> bound = sqrt(3/fan_in); bias zeroed in _init_weight_.
    bound_p = (3.0 / distribution_size) ** 0.5
    params["wp"] = jax.random.uniform(next(k), (distribution_size, 1),
                                      jnp.float32, minval=-bound_p, maxval=bound_p)
    params["bp"] = jnp.zeros((1, 1), jnp.float32)
    return params


def prepare_ncf_params(params, *, compute_dtype=jnp.bfloat16, out_dtype=None):
    """One-time weight prep (cast / W0 split / lane padding), hoisted out of the forward path."""
    if out_dtype is None:
        out_dtype = compute_dtype
    mlp = params["mlp"]
    n_layers = len(mlp)
    mlp_embed = params["embed_user_MLP"].shape[1]
    emb_dim = params["wd"].shape[0]
    dist_size = params["wd"].shape[1]
    pad_width = _round_up(dist_size + 1, 128)   # lane-dense output slab width

    w0, b0 = mlp[0]
    weights = [w0[:mlp_embed].astype(compute_dtype),     # W0_top
               w0[mlp_embed:].astype(compute_dtype),     # W0_bot
               b0]                                       # biases stay f32 (VPU adds in f32)
    for w, b in mlp[1:]:
        weights += [w.astype(compute_dtype), b]

    wd_pad = jnp.zeros((emb_dim, pad_width), jnp.float32)
    wd_pad = wd_pad.at[:, :dist_size].set(params["wd"]).astype(compute_dtype)
    bd_pad = jnp.zeros((1, pad_width), jnp.float32).at[:, :dist_size].set(params["bd"])
    wp_pad = jnp.zeros((1, pad_width), jnp.float32).at[:, :dist_size].set(params["wp"][:, 0])
    onehot = jnp.zeros((1, pad_width), jnp.float32).at[0, dist_size].set(1.0)
    weights += [wd_pad, bd_pad, wp_pad, params["bp"], onehot]

    flops_per_row = sum(2 * w.shape[0] * w.shape[1] for w, _ in mlp)
    flops_per_row += 2 * emb_dim * pad_width + 2 * pad_width

    return {
        # Tables kept in f32: the fused gather uses 32-bit-aligned single-row DMAs
        # (no sub-word bf16 row scatter into packed VMEM tiles); operands are cast to
        # compute_dtype in-kernel before the MXU.
        "eu_table": params["embed_user_MLP"],
        "ei_table": params["embed_item_MLP"],
        "weights": weights,
        "meta": dict(n_layers=n_layers, mlp_embed=mlp_embed, emb_dim=emb_dim,
                     dist_size=dist_size, pad_width=pad_width,
                     compute_dtype=compute_dtype, out_dtype=out_dtype,
                     flops_per_row=flops_per_row),
    }


def ncf_forward(params, data_instance, *, batch_tile=1024,
                compute_dtype=jnp.bfloat16, out_dtype=None, fuse_gather=True):
    """Reproduces NCF.forward (model='MLP'): returns (prediction.squeeze(), distribution_output)."""
    if not ("weights" in params and "meta" in params):
        params = prepare_ncf_params(params, compute_dtype=compute_dtype, out_dtype=out_dtype)
    meta = params["meta"]
    compute_dtype = meta["compute_dtype"]
    out_dtype = meta["out_dtype"]
    n_layers = meta["n_layers"]
    mlp_embed = meta["mlp_embed"]
    dist_size = meta["dist_size"]
    pad_width = meta["pad_width"]

    eu_table = params["eu_table"]
    ei_table = params["ei_table"]
    weight_args = params["weights"]

    users = data_instance[:, 0].astype(jnp.int32)
    items = data_instance[:, 1].astype(jnp.int32)
    batch = users.shape[0]

    emb_bytes = eu_table.dtype.itemsize                     # f32 gather rows
    cmp_bytes = jnp.dtype(compute_dtype).itemsize
    out_bytes = jnp.dtype(out_dtype).itemsize

    # Sublane packing of the BlockSpec'd arrays decides batch-tile granularity.
    sub = 32 // out_bytes
    if not fuse_gather:
        sub = max(sub, 32 // cmp_bytes)
    sub = max(sub, 8)

    # ---- generation-aware batch tile: biggest tile that fits the scoped-VMEM budget ----
    vmem_ceiling = _vmem_ceiling_bytes()
    weight_bytes = sum(int(w.size) * w.dtype.itemsize for w in weight_args)
    in_factor = 2 if fuse_gather else 4          # single-buffered scratch vs double-buffered streams
    in_row_bytes = emb_bytes if fuse_gather else cmp_bytes
    per_row = in_factor * mlp_embed * in_row_bytes + 2 * pad_width * out_bytes
    bt_cap = max((vmem_ceiling - 2 * weight_bytes - (4 << 20)) // per_row, sub)
    bt = int(min(batch_tile, bt_cap, _round_up(batch, sub)))
    bt = max((bt // sub) * sub, sub)

    n_tiles = pl.cdiv(batch, bt)
    if n_tiles > 1 and n_tiles % 2 == 1:
        # Keep the ("parallel",) batch grid balanced over v7x's two TensorCores.
        bt = max(_round_up(pl.cdiv(batch, n_tiles + 1), sub), sub)
        n_tiles = pl.cdiv(batch, bt)
    b_pad = n_tiles * bt

    if b_pad != batch:
        # Pad the cheap id vectors; padded rows gather (valid) row 0 and are sliced off.
        users = jnp.pad(users, (0, b_pad - batch))
        items = jnp.pad(items, (0, b_pad - batch))

    tile_map = lambda i, *_: (i, 0)     # noqa: E731
    const_map = lambda i, *_: (0, 0)    # noqa: E731

    # ---- advisory cost estimate (includes the in-kernel gather traffic) ----
    flops = int(b_pad * meta["flops_per_row"])
    bytes_accessed = int(2 * b_pad * mlp_embed * emb_bytes   # gathered embedding rows
                         + weight_bytes
                         + b_pad * pad_width * out_bytes     # lane-dense output slab
                         + 2 * b_pad * 4)                    # id vectors
    cost = pl.CostEstimate(flops=flops, transcendentals=0, bytes_accessed=bytes_accessed)

    vmem_needed = (2 * weight_bytes
                   + in_factor * bt * mlp_embed * in_row_bytes
                   + 2 * bt * pad_width * out_bytes
                   + (2 << 20))
    vmem_limit = int(min(max(vmem_needed, 8 << 20), vmem_ceiling))

    out_spec = pl.BlockSpec((bt, pad_width), tile_map)
    out_shape = jax.ShapeDtypeStruct((b_pad, pad_width), out_dtype)

    if fuse_gather:
        kernel = _make_fused_kernel(n_layers, compute_dtype, bt)
        num_prefetch = 2
        lead_specs = [pl.BlockSpec(memory_space=pl.ANY),      # embed_user table (HBM)
                      pl.BlockSpec(memory_space=pl.ANY)]      # embed_item table (HBM)
        scratch = [pltpu.VMEM((bt, mlp_embed), eu_table.dtype),
                   pltpu.VMEM((bt, mlp_embed), ei_table.dtype),
                   pltpu.SemaphoreType.DMA((2,))]
        call_args = (users, items, eu_table, ei_table, *weight_args)
    else:
        kernel = _make_streamed_kernel(n_layers, compute_dtype)
        num_prefetch = 0
        lead_specs = [pl.BlockSpec((bt, mlp_embed), tile_map),
                      pl.BlockSpec((bt, mlp_embed), tile_map)]
        scratch = []
        eu = eu_table[users].astype(compute_dtype)
        ei = ei_table[items].astype(compute_dtype)
        call_args = (eu, ei, *weight_args)

    def _run(single_buffer_weights):
        if single_buffer_weights:
            # Constant-index weights: single buffer halves their VMEM footprint.
            w_specs = [pl.BlockSpec(w.shape, const_map, pipeline_mode=pl.Buffered(1))
                       for w in weight_args]
        else:
            w_specs = [pl.BlockSpec(w.shape, const_map) for w in weight_args]
        grid_spec = pltpu.PrefetchScalarGridSpec(
            num_scalar_prefetch=num_prefetch,
            grid=(n_tiles,),
            in_specs=lead_specs + w_specs,
            out_specs=out_spec,
            scratch_shapes=scratch)
        return pl.pallas_call(
            kernel,
            grid_spec=grid_spec,
            out_shape=out_shape,
            compiler_params=pltpu.CompilerParams(
                dimension_semantics=("parallel",),
                vmem_limit_bytes=vmem_limit),
            cost_estimate=cost,
        )(*call_args)

    try:
        slab = _run(True)
    except Exception:
        # pipeline_mode=pl.Buffered(1) not supported on this jax build -> default buffering.
        slab = _run(False)

    distribution_output = slab[:batch, :dist_size]
    prediction = slab[:batch, dist_size]
    return prediction, distribution_output


def ncf_reference(params, data_instance):
    """Pure-JAX reference for correctness checking."""
    users = data_instance[:, 0].astype(jnp.int32)
    items = data_instance[:, 1].astype(jnp.int32)
    h = jnp.concatenate(
        [params["embed_user_MLP"][users], params["embed_item_MLP"][items]], axis=-1)
    for w, b in params["mlp"]:
        h = jnp.maximum(h @ w + b, 0.0)
    dist = h @ params["wd"] + params["bd"]
    probs = jnp.maximum(dist, 0.0)
    pred = probs @ params["wp"] + params["bp"]
    return pred.squeeze(), dist


if __name__ == "__main__":
    cfg = dict(
        num_users=32,
        num_items=48,
        embedding_dimension=16,
        n_hidden_layers=2,
        distribution_size=32,
        dropout=0.0,
        model="MLP",
    )
    batch = 8

    root = jax.random.PRNGKey(0)
    k_params, k_u, k_i = jax.random.split(root, 3)

    params = init_ncf_params(
        k_params,
        num_users=cfg["num_users"],
        num_items=cfg["num_items"],
        embedding_dimension=cfg["embedding_dimension"],
        n_hidden_layers=cfg["n_hidden_layers"],
        distribution_size=cfg["distribution_size"],
    )

    users = jax.random.randint(k_u, (batch,), 0, cfg["num_users"])
    items = jax.random.randint(k_i, (batch,), 0, cfg["num_items"])
    # data_instance[:, 0]=users, data_instance[:, 1]=items (float, like the torch path).
    data_instance = jnp.stack([users, items], axis=1).astype(jnp.float32)

    ref_pred, ref_dist = ncf_reference(params, data_instance)

    # 1) f32 path with fused in-kernel gather (exact vs reference).
    prep_f32 = prepare_ncf_params(params, compute_dtype=jnp.float32)
    prediction, distribution_output = ncf_forward(prep_f32, data_instance)
    jax.block_until_ready((prediction, distribution_output))
    assert prediction.shape == (batch,)
    assert distribution_output.shape == (batch, cfg["distribution_size"])
    assert jnp.allclose(prediction, ref_pred, rtol=1e-5, atol=1e-5)
    assert jnp.allclose(distribution_output, ref_dist, rtol=1e-5, atol=1e-5)

    # 2) Larger, non-divisible batch: multi-tile grid, batch padding, even-grid balance.
    big_batch = 300
    ku2, ki2 = jax.random.split(jax.random.PRNGKey(1))
    big_data = jnp.stack(
        [jax.random.randint(ku2, (big_batch,), 0, cfg["num_users"]),
         jax.random.randint(ki2, (big_batch,), 0, cfg["num_items"])],
        axis=1).astype(jnp.float32)
    big_pred, big_dist = ncf_forward(prep_f32, big_data, batch_tile=64)
    jax.block_until_ready((big_pred, big_dist))
    ref_bp, ref_bd = ncf_reference(params, big_data)
    assert jnp.allclose(big_pred, ref_bp, rtol=1e-5, atol=1e-5)
    assert jnp.allclose(big_dist, ref_bd, rtol=1e-5, atol=1e-5)

    # 3) Default bf16 compute + bf16 output slab (halved HBM writeback), loose tolerance.
    prep_bf16 = prepare_ncf_params(params)   # compute_dtype=bf16, out_dtype=bf16
    bf_pred, bf_dist = ncf_forward(prep_bf16, data_instance)
    jax.block_until_ready((bf_pred, bf_dist))
    assert jnp.allclose(bf_pred.astype(jnp.float32), ref_pred, rtol=5e-2, atol=1e-2)
    assert jnp.allclose(bf_dist.astype(jnp.float32), ref_dist, rtol=5e-2, atol=1e-2)

    # 4) Wrapper-gather fallback path stays available and exact.
    fb_pred, fb_dist = ncf_forward(prep_f32, data_instance, fuse_gather=False)
    jax.block_until_ready((fb_pred, fb_dist))
    assert jnp.allclose(fb_pred, ref_pred, rtol=1e-5, atol=1e-5)
    assert jnp.allclose(fb_dist, ref_dist, rtol=1e-5, atol=1e-5)

    print("KERNEL_OK")
</pallas_src>

<mosaic_0001>
module attributes {stable_mosaic.version = 11 : i64} {
  func.func @kernel(%arg0: i32, %arg1: memref<8xi32, #tpu.memory_space<smem>>, %arg2: memref<8xi32, #tpu.memory_space<smem>>, %arg3: memref<32x32xf32, #tpu.memory_space<any>>, %arg4: memref<48x32xf32, #tpu.memory_space<any>>, %arg5: memref<32x32xf32, #tpu.memory_space<vmem>>, %arg6: memref<32x32xf32, #tpu.memory_space<vmem>>, %arg7: memref<1x32xf32, #tpu.memory_space<vmem>>, %arg8: memref<32x16xf32, #tpu.memory_space<vmem>>, %arg9: memref<1x16xf32, #tpu.memory_space<vmem>>, %arg10: memref<16x128xf32, #tpu.memory_space<vmem>>, %arg11: memref<1x128xf32, #tpu.memory_space<vmem>>, %arg12: memref<1x128xf32, #tpu.memory_space<vmem>>, %arg13: memref<1x1xf32, #tpu.memory_space<vmem>>, %arg14: memref<1x128xf32, #tpu.memory_space<vmem>>, %arg15: memref<8x128xf32, #tpu.memory_space<vmem>>, %arg16: memref<8x32xf32, #tpu.memory_space<vmem>>, %arg17: memref<8x32xf32, #tpu.memory_space<vmem>>, %arg18: memref<2x!tpu.dma_semaphore, #tpu.memory_space<semaphore_mem>>) attributes {dimension_semantics = [#tpu.dimension_semantics<parallel>], iteration_bounds = array<i64: 1>, scalar_prefetch = 2 : i64, scratch_operands = 3 : i64, tpu.core_type = #tpu.core_type<tc>, window_params = [{}, {}, {pipeline_mode = #tpu.pipeline_mode<synchronous>, transform_indices = @transform_2, window_bounds = array<i64: 32, 32>}, {pipeline_mode = #tpu.pipeline_mode<synchronous>, transform_indices = @transform_3, window_bounds = array<i64: 32, 32>}, {pipeline_mode = #tpu.pipeline_mode<synchronous>, transform_indices = @transform_4, window_bounds = array<i64: 1, 32>}, {pipeline_mode = #tpu.pipeline_mode<synchronous>, transform_indices = @transform_5, window_bounds = array<i64: 32, 16>}, {pipeline_mode = #tpu.pipeline_mode<synchronous>, transform_indices = @transform_6, window_bounds = array<i64: 1, 16>}, {pipeline_mode = #tpu.pipeline_mode<synchronous>, transform_indices = @transform_7, window_bounds = array<i64: 16, 128>}, {pipeline_mode = #tpu.pipeline_mode<synchronous>, transform_indices = @transform_8, window_bounds = array<i64: 1, 128>}, {pipeline_mode = #tpu.pipeline_mode<synchronous>, transform_indices = @transform_9, window_bounds = array<i64: 1, 128>}, {pipeline_mode = #tpu.pipeline_mode<synchronous>, transform_indices = @transform_10, window_bounds = array<i64: 1, 1>}, {pipeline_mode = #tpu.pipeline_mode<synchronous>, transform_indices = @transform_11, window_bounds = array<i64: 1, 128>}, {transform_indices = @transform_12, window_bounds = array<i64: 8, 128>}]} {
    %c8_i32 = arith.constant 8 : i32
    %0 = arith.muli %arg0, %c8_i32 : i32
    %c0_i32 = arith.constant 0 : i32
    %c8_i32_0 = arith.constant 8 : i32
    %1 = arith.addi %c0_i32, %c8_i32_0 : i32
    %c1_i32 = arith.constant 1 : i32
    scf.for %arg19 = %c0_i32 to %1 step %c1_i32  : i32 {
      %43 = arith.addi %0, %arg19 : i32
      %44 = arith.index_cast %43 : i32 to index
      %45 = memref.load %arg1[%44] : memref<8xi32, #tpu.memory_space<smem>>
      %c0_i32_38 = arith.constant 0 : i32
      %c0_i32_39 = arith.constant 0 : i32
      %46 = tpu.memref_slice %arg3[%45, %c0_i32_39] : memref<32x32xf32, #tpu.memory_space<any>> -> memref<1x32xf32, #tpu.memory_space<any>>
      %47 = tpu.memref_squeeze %46 : memref<1x32xf32, #tpu.memory_space<any>> -> memref<32xf32, #tpu.memory_space<any>>
      %c0_i32_40 = arith.constant 0 : i32
      %48 = tpu.memref_slice %arg16[%arg19, %c0_i32_40] : memref<8x32xf32, #tpu.memory_space<vmem>> -> memref<1x32xf32, #tpu.memory_space<vmem>>
      %49 = tpu.memref_squeeze %48 : memref<1x32xf32, #tpu.memory_space<vmem>> -> memref<32xf32, #tpu.memory_space<vmem>>
      %50 = tpu.memref_slice %arg18[%c0_i32_38] : memref<2x!tpu.dma_semaphore, #tpu.memory_space<semaphore_mem>> -> memref<1x!tpu.dma_semaphore, #tpu.memory_space<semaphore_mem>>
      %51 = tpu.memref_squeeze %50 : memref<1x!tpu.dma_semaphore, #tpu.memory_space<semaphore_mem>> -> memref<!tpu.dma_semaphore, #tpu.memory_space<semaphore_mem>>
      tpu.enqueue_dma source(%47 : memref<32xf32, #tpu.memory_space<any>>) target(%49 : memref<32xf32, #tpu.memory_space<vmem>>) target_semaphore(%51 : memref<!tpu.dma_semaphore, #tpu.memory_space<semaphore_mem>>)
      %52 = arith.addi %0, %arg19 : i32
      %53 = arith.index_cast %52 : i32 to index
      %54 = memref.load %arg2[%53] : memref<8xi32, #tpu.memory_space<smem>>
      %c1_i32_41 = arith.constant 1 : i32
      %c0_i32_42 = arith.constant 0 : i32
      %55 = tpu.memref_slice %arg4[%54, %c0_i32_42] : memref<48x32xf32, #tpu.memory_space<any>> -> memref<1x32xf32, #tpu.memory_space<any>>
      %56 = tpu.memref_squeeze %55 : memref<1x32xf32, #tpu.memory_space<any>> -> memref<32xf32, #tpu.memory_space<any>>
      %c0_i32_43 = arith.constant 0 : i32
      %57 = tpu.memref_slice %arg17[%arg19, %c0_i32_43] : memref<8x32xf32, #tpu.memory_space<vmem>> -> memref<1x32xf32, #tpu.memory_space<vmem>>
      %58 = tpu.memref_squeeze %57 : memref<1x32xf32, #tpu.memory_space<vmem>> -> memref<32xf32, #tpu.memory_space<vmem>>
      %59 = tpu.memref_slice %arg18[%c1_i32_41] : memref<2x!tpu.dma_semaphore, #tpu.memory_space<semaphore_mem>> -> memref<1x!tpu.dma_semaphore, #tpu.memory_space<semaphore_mem>>
      %60 = tpu.memref_squeeze %59 : memref<1x!tpu.dma_semaphore, #tpu.memory_space<semaphore_mem>> -> memref<!tpu.dma_semaphore, #tpu.memory_space<semaphore_mem>>
      tpu.enqueue_dma source(%56 : memref<32xf32, #tpu.memory_space<any>>) target(%58 : memref<32xf32, #tpu.memory_space<vmem>>) target_semaphore(%60 : memref<!tpu.dma_semaphore, #tpu.memory_space<semaphore_mem>>)
    }
    %c8_i32_1 = arith.constant 8 : i32
    %c0_i32_2 = arith.constant 0 : i32
    %c8_i32_3 = arith.constant 8 : i32
    %2 = arith.addi %c0_i32_2, %c8_i32_3 : i32
    %c1_i32_4 = arith.constant 1 : i32
    scf.for %arg19 = %c0_i32_2 to %2 step %c1_i32_4  : i32 {
      %c0_i32_38 = arith.constant 0 : i32
      %c0_i32_39 = arith.constant 0 : i32
      %c0_i32_40 = arith.constant 0 : i32
      %43 = tpu.memref_slice %arg3[%c0_i32_38, %c0_i32_40] : memref<32x32xf32, #tpu.memory_space<any>> -> memref<1x32xf32, #tpu.memory_space<any>>
      %44 = tpu.memref_squeeze %43 : memref<1x32xf32, #tpu.memory_space<any>> -> memref<32xf32, #tpu.memory_space<any>>
      %c0_i32_41 = arith.constant 0 : i32
      %45 = tpu.memref_slice %arg16[%arg19, %c0_i32_41] : memref<8x32xf32, #tpu.memory_space<vmem>> -> memref<1x32xf32, #tpu.memory_space<vmem>>
      %46 = tpu.memref_squeeze %45 : memref<1x32xf32, #tpu.memory_space<vmem>> -> memref<32xf32, #tpu.memory_space<vmem>>
      %47 = tpu.memref_slice %arg18[%c0_i32_39] : memref<2x!tpu.dma_semaphore, #tpu.memory_space<semaphore_mem>> -> memref<1x!tpu.dma_semaphore, #tpu.memory_space<semaphore_mem>>
      %48 = tpu.memref_squeeze %47 : memref<1x!tpu.dma_semaphore, #tpu.memory_space<semaphore_mem>> -> memref<!tpu.dma_semaphore, #tpu.memory_space<semaphore_mem>>
      tpu.wait_dma2 semaphore(%48 : memref<!tpu.dma_semaphore, #tpu.memory_space<semaphore_mem>>) src(%44 : memref<32xf32, #tpu.memory_space<any>>) dst(%46 : memref<32xf32, #tpu.memory_space<vmem>>)
      %c0_i32_42 = arith.constant 0 : i32
      %c1_i32_43 = arith.constant 1 : i32
      %c0_i32_44 = arith.constant 0 : i32
      %49 = tpu.memref_slice %arg4[%c0_i32_42, %c0_i32_44] : memref<48x32xf32, #tpu.memory_space<any>> -> memref<1x32xf32, #tpu.memory_space<any>>
      %50 = tpu.memref_squeeze %49 : memref<1x32xf32, #tpu.memory_space<any>> -> memref<32xf32, #tpu.memory_space<any>>
      %c0_i32_45 = arith.constant 0 : i32
      %51 = tpu.memref_slice %arg17[%arg19, %c0_i32_45] : memref<8x32xf32, #tpu.memory_space<vmem>> -> memref<1x32xf32, #tpu.memory_space<vmem>>
      %52 = tpu.memref_squeeze %51 : memref<1x32xf32, #tpu.memory_space<vmem>> -> memref<32xf32, #tpu.memory_space<vmem>>
      %53 = tpu.memref_slice %arg18[%c1_i32_43] : memref<2x!tpu.dma_semaphore, #tpu.memory_space<semaphore_mem>> -> memref<1x!tpu.dma_semaphore, #tpu.memory_space<semaphore_mem>>
      %54 = tpu.memref_squeeze %53 : memref<1x!tpu.dma_semaphore, #tpu.memory_space<semaphore_mem>> -> memref<!tpu.dma_semaphore, #tpu.memory_space<semaphore_mem>>
      tpu.wait_dma2 semaphore(%54 : memref<!tpu.dma_semaphore, #tpu.memory_space<semaphore_mem>>) src(%50 : memref<32xf32, #tpu.memory_space<any>>) dst(%52 : memref<32xf32, #tpu.memory_space<vmem>>)
    }
    %c8_i32_5 = arith.constant 8 : i32
    %c0 = arith.constant 0 : index
    %c0_6 = arith.constant 0 : index
    %3 = vector.load %arg16[%c0, %c0_6] : memref<8x32xf32, #tpu.memory_space<vmem>>, vector<8x32xf32>
    %c0_7 = arith.constant 0 : index
    %c0_8 = arith.constant 0 : index
    %4 = vector.load %arg17[%c0_7, %c0_8] : memref<8x32xf32, #tpu.memory_space<vmem>>, vector<8x32xf32>
    %c0_9 = arith.constant 0 : index
    %c0_10 = arith.constant 0 : index
    %5 = vector.load %arg5[%c0_9, %c0_10] : memref<32x32xf32, #tpu.memory_space<vmem>>, vector<32x32xf32>
    %c0_11 = arith.constant 0 : index
    %c0_12 = arith.constant 0 : index
    %6 = vector.load %arg6[%c0_11, %c0_12] : memref<32x32xf32, #tpu.memory_space<vmem>>, vector<32x32xf32>
    %c0_13 = arith.constant 0 : index
    %c0_14 = arith.constant 0 : index
    %7 = vector.load %arg7[%c0_13, %c0_14] : memref<1x32xf32, #tpu.memory_space<vmem>>, vector<1x32xf32>
    %cst = arith.constant dense<0.000000e+00> : vector<8x32xf32>
    %8 = tpu.matmul %3, %5, %cst {dimension_numbers = #tpu.dot_dimension_numbers<[1], [0], [0], [1], [0, 0, 1, 1], [], []>} : vector<8x32xf32>, vector<32x32xf32>, vector<8x32xf32> -> vector<8x32xf32>
    %cst_15 = arith.constant dense<0.000000e+00> : vector<8x32xf32>
    %9 = tpu.matmul %4, %6, %cst_15 {dimension_numbers = #tpu.dot_dimension_numbers<[1], [0], [0], [1], [0, 0, 1, 1], [], []>} : vector<8x32xf32>, vector<32x32xf32>, vector<8x32xf32> -> vector<8x32xf32>
    %10 = arith.addf %8, %9 : vector<8x32xf32>
    %11 = vector.broadcast %7 : vector<1x32xf32> to vector<8x32xf32>
    %12 = arith.addf %10, %11 : vector<8x32xf32>
    %cst_16 = arith.constant 0.000000e+00 : f32
    %13 = vector.broadcast %cst_16 : f32 to vector<8x32xf32>
    %14 = arith.maximumf %12, %13 : vector<8x32xf32>
    %c0_17 = arith.constant 0 : index
    %c0_18 = arith.constant 0 : index
    %15 = vector.load %arg8[%c0_17, %c0_18] : memref<32x16xf32, #tpu.memory_space<vmem>>, vector<32x16xf32>
    %c0_19 = arith.constant 0 : index
    %c0_20 = arith.constant 0 : index
    %16 = vector.load %arg9[%c0_19, %c0_20] : memref<1x16xf32, #tpu.memory_space<vmem>>, vector<1x16xf32>
    %cst_21 = arith.constant dense<0.000000e+00> : vector<8x16xf32>
    %17 = tpu.matmul %14, %15, %cst_21 {dimension_numbers = #tpu.dot_dimension_numbers<[1], [0], [0], [1], [0, 0, 1, 1], [], []>} : vector<8x32xf32>, vector<32x16xf32>, vector<8x16xf32> -> vector<8x16xf32>
    %18 = vector.broadcast %16 : vector<1x16xf32> to vector<8x16xf32>
    %19 = arith.addf %17, %18 : vector<8x16xf32>
    %cst_22 = arith.constant 0.000000e+00 : f32
    %20 = vector.broadcast %cst_22 : f32 to vector<8x16xf32>
    %21 = arith.maximumf %19, %20 : vector<8x16xf32>
    %c0_23 = arith.constant 0 : index
    %c0_24 = arith.constant 0 : index
    %22 = vector.load %arg10[%c0_23, %c0_24] : memref<16x128xf32, #tpu.memory_space<vmem>>, vector<16x128xf32>
    %c0_25 = arith.constant 0 : index
    %c0_26 = arith.constant 0 : index
    %23 = vector.load %arg11[%c0_25, %c0_26] : memref<1x128xf32, #tpu.memory_space<vmem>>, vector<1x128xf32>
    %c0_27 = arith.constant 0 : index
    %c0_28 = arith.constant 0 : index
    %24 = vector.load %arg12[%c0_27, %c0_28] : memref<1x128xf32, #tpu.memory_space<vmem>>, vector<1x128xf32>
    %c0_29 = arith.constant 0 : index
    %c0_30 = arith.constant 0 : index
    %25 = vector.load %arg13[%c0_29, %c0_30] : memref<1x1xf32, #tpu.memory_space<vmem>>, vector<1x1xf32>
    %c0_31 = arith.constant 0 : index
    %c0_32 = arith.constant 0 : index
    %26 = vector.load %arg14[%c0_31, %c0_32] : memref<1x128xf32, #tpu.memory_space<vmem>>, vector<1x128xf32>
    %cst_33 = arith.constant dense<0.000000e+00> : vector<8x128xf32>
    %27 = tpu.matmul %21, %22, %cst_33 {dimension_numbers = #tpu.dot_dimension_numbers<[1], [0], [0], [1], [0, 0, 1, 1], [], []>} : vector<8x16xf32>, vector<16x128xf32>, vector<8x128xf32> -> vector<8x128xf32>
    %28 = vector.broadcast %23 : vector<1x128xf32> to vector<8x128xf32>
    %29 = arith.addf %27, %28 : vector<8x128xf32>
    %cst_34 = arith.constant 0.000000e+00 : f32
    %30 = vector.broadcast %cst_34 : f32 to vector<8x128xf32>
    %31 = arith.maximumf %29, %30 : vector<8x128xf32>
    %32 = vector.broadcast %24 : vector<1x128xf32> to vector<8x128xf32>
    %33 = arith.mulf %31, %32 : vector<8x128xf32>
    %cst_35 = arith.constant dense<0.000000e+00> : vector<8xf32>
    %34 = vector.multi_reduction <add>, %33, %cst_35 [1] : vector<8x128xf32> to vector<8xf32>
    %35 = vector.shape_cast %34 : vector<8xf32> to vector<8x1xf32>
    %36 = vector.broadcast %25 : vector<1x1xf32> to vector<8x1xf32>
    %37 = arith.addf %35, %36 : vector<8x1xf32>
    %38 = vector.broadcast %37 : vector<8x1xf32> to vector<8x128xf32>
    %39 = vector.broadcast %26 : vector<1x128xf32> to vector<8x128xf32>
    %40 = arith.mulf %38, %39 : vector<8x128xf32>
    %41 = arith.addf %29, %40 : vector<8x128xf32>
    %c0_36 = arith.constant 0 : index
    %c0_37 = arith.constant 0 : index
    %42 = vector.load %arg15[%c0_36, %c0_37] : memref<8x128xf32, #tpu.memory_space<vmem>>, vector<8x128xf32>
    tpu.vector_store %arg15[%c0_36, %c0_37], %41 {strides = array<i32>} : memref<8x128xf32, #tpu.memory_space<vmem>>, vector<8x128xf32>,
    return
  }
  func.func @transform_2(%arg0: i32, %arg1: memref<8xi32, #tpu.memory_space<smem>>, %arg2: memref<8xi32, #tpu.memory_space<smem>>) -> (i32, i32) {
    %c0_i32 = arith.constant 0 : i32
    %c0_i32_0 = arith.constant 0 : i32
    %c0_i32_1 = arith.constant 0 : i32
    return %c0_i32, %c0_i32_0 : i32, i32
  }
  func.func @transform_3(%arg0: i32, %arg1: memref<8xi32, #tpu.memory_space<smem>>, %arg2: memref<8xi32, #tpu.memory_space<smem>>) -> (i32, i32) {
    %c0_i32 = arith.constant 0 : i32
    %c0_i32_0 = arith.constant 0 : i32
    %c0_i32_1 = arith.constant 0 : i32
    return %c0_i32, %c0_i32_0 : i32, i32
  }
  func.func @transform_4(%arg0: i32, %arg1: memref<8xi32, #tpu.memory_space<smem>>, %arg2: memref<8xi32, #tpu.memory_space<smem>>) -> (i32, i32) {
    %c0_i32 = arith.constant 0 : i32
    %c0_i32_0 = arith.constant 0 : i32
    %c0_i32_1 = arith.constant 0 : i32
    return %c0_i32, %c0_i32_0 : i32, i32
  }
  func.func @transform_5(%arg0: i32, %arg1: memref<8xi32, #tpu.memory_space<smem>>, %arg2: memref<8xi32, #tpu.memory_space<smem>>) -> (i32, i32) {
    %c0_i32 = arith.constant 0 : i32
    %c0_i32_0 = arith.constant 0 : i32
    %c0_i32_1 = arith.constant 0 : i32
    return %c0_i32, %c0_i32_0 : i32, i32
  }
  func.func @transform_6(%arg0: i32, %arg1: memref<8xi32, #tpu.memory_space<smem>>, %arg2: memref<8xi32, #tpu.memory_space<smem>>) -> (i32, i32) {
    %c0_i32 = arith.constant 0 : i32
    %c0_i32_0 = arith.constant 0 : i32
    %c0_i32_1 = arith.constant 0 : i32
    return %c0_i32, %c0_i32_0 : i32, i32
  }
  func.func @transform_7(%arg0: i32, %arg1: memref<8xi32, #tpu.memory_space<smem>>, %arg2: memref<8xi32, #tpu.memory_space<smem>>) -> (i32, i32) {
    %c0_i32 = arith.constant 0 : i32
    %c0_i32_0 = arith.constant 0 : i32
    %c0_i32_1 = arith.constant 0 : i32
    return %c0_i32, %c0_i32_0 : i32, i32
  }
  func.func @transform_8(%arg0: i32, %arg1: memref<8xi32, #tpu.memory_space<smem>>, %arg2: memref<8xi32, #tpu.memory_space<smem>>) -> (i32, i32) {
    %c0_i32 = arith.constant 0 : i32
    %c0_i32_0 = arith.constant 0 : i32
    %c0_i32_1 = arith.constant 0 : i32
    return %c0_i32, %c0_i32_0 : i32, i32
  }
  func.func @transform_9(%arg0: i32, %arg1: memref<8xi32, #tpu.memory_space<smem>>, %arg2: memref<8xi32, #tpu.memory_space<smem>>) -> (i32, i32) {
    %c0_i32 = arith.constant 0 : i32
    %c0_i32_0 = arith.constant 0 : i32
    %c0_i32_1 = arith.constant 0 : i32
    return %c0_i32, %c0_i32_0 : i32, i32
  }
  func.func @transform_10(%arg0: i32, %arg1: memref<8xi32, #tpu.memory_space<smem>>, %arg2: memref<8xi32, #tpu.memory_space<smem>>) -> (i32, i32) {
    %c0_i32 = arith.constant 0 : i32
    %c0_i32_0 = arith.constant 0 : i32
    %c0_i32_1 = arith.constant 0 : i32
    return %c0_i32, %c0_i32_0 : i32, i32
  }
  func.func @transform_11(%arg0: i32, %arg1: memref<8xi32, #tpu.memory_space<smem>>, %arg2: memref<8xi32, #tpu.memory_space<smem>>) -> (i32, i32) {
    %c0_i32 = arith.constant 0 : i32
    %c0_i32_0 = arith.constant 0 : i32
    %c0_i32_1 = arith.constant 0 : i32
    return %c0_i32, %c0_i32_0 : i32, i32
  }
  func.func @transform_12(%arg0: i32, %arg1: memref<8xi32, #tpu.memory_space<smem>>, %arg2: memref<8xi32, #tpu.memory_space<smem>>) -> (i32, i32) {
    %c0_i32 = arith.constant 0 : i32
    %c0_i32_0 = arith.constant 0 : i32
    return %arg0, %c0_i32 : i32, i32
  }
}

module attributes {stable_mosaic.version = 11 : i64} {
  func.func @kernel(%arg0: i32, %arg1: memref<8xi32, #tpu.memory_space<smem>>, %arg2: memref<8xi32, #tpu.memory_space<smem>>, %arg3: memref<32x32xf32, #tpu.memory_space<any>>, %arg4: memref<48x32xf32, #tpu.memory_space<any>>, %arg5: memref<32x32xf32, #tpu.memory_space<vmem>>, %arg6: memref<32x32xf32, #tpu.memory_space<vmem>>, %arg7: memref<1x32xf32, #tpu.memory_space<vmem>>, %arg8: memref<32x16xf32, #tpu.memory_space<vmem>>, %arg9: memref<1x16xf32, #tpu.memory_space<vmem>>, %arg10: memref<16x128xf32, #tpu.memory_space<vmem>>, %arg11: memref<1x128xf32, #tpu.memory_space<vmem>>, %arg12: memref<1x128xf32, #tpu.memory_space<vmem>>, %arg13: memref<1x1xf32, #tpu.memory_space<vmem>>, %arg14: memref<1x128xf32, #tpu.memory_space<vmem>>, %arg15: memref<8x128xf32, #tpu.memory_space<vmem>>, %arg16: memref<8x32xf32, #tpu.memory_space<vmem>>, %arg17: memref<8x32xf32, #tpu.memory_space<vmem>>, %arg18: memref<2x!tpu.dma_semaphore, #tpu.memory_space<semaphore_mem>>) attributes {dimension_semantics = [#tpu.dimension_semantics<parallel>], iteration_bounds = array<i64: 1>, scalar_prefetch = 2 : i64, scratch_operands = 3 : i64, tpu.core_type = #tpu.core_type<tc>, window_params = [{}, {}, {pipeline_mode = #tpu.pipeline_mode<synchronous>, transform_indices = @transform_2, window_bounds = array<i64: 32, 32>}, {pipeline_mode = #tpu.pipeline_mode<synchronous>, transform_indices = @transform_3, window_bounds = array<i64: 32, 32>}, {pipeline_mode = #tpu.pipeline_mode<synchronous>, transform_indices = @transform_4, window_bounds = array<i64: 1, 32>}, {pipeline_mode = #tpu.pipeline_mode<synchronous>, transform_indices = @transform_5, window_bounds = array<i64: 32, 16>}, {pipeline_mode = #tpu.pipeline_mode<synchronous>, transform_indices = @transform_6, window_bounds = array<i64: 1, 16>}, {pipeline_mode = #tpu.pipeline_mode<synchronous>, transform_indices = @transform_7, window_bounds = array<i64: 16, 128>}, {pipeline_mode = #tpu.pipeline_mode<synchronous>, transform_indices = @transform_8, window_bounds = array<i64: 1, 128>}, {pipeline_mode = #tpu.pipeline_mode<synchronous>, transform_indices = @transform_9, window_bounds = array<i64: 1, 128>}, {pipeline_mode = #tpu.pipeline_mode<synchronous>, transform_indices = @transform_10, window_bounds = array<i64: 1, 1>}, {pipeline_mode = #tpu.pipeline_mode<synchronous>, transform_indices = @transform_11, window_bounds = array<i64: 1, 128>}, {transform_indices = @transform_12, window_bounds = array<i64: 8, 128>}]} {
    %c8_i32 = arith.constant 8 : i32
    %0 = arith.muli %arg0, %c8_i32 : i32
    %c0_i32 = arith.constant 0 : i32
    %c8_i32_0 = arith.constant 8 : i32
    %1 = arith.addi %c0_i32, %c8_i32_0 : i32
    %c1_i32 = arith.constant 1 : i32
    scf.for %arg19 = %c0_i32 to %1 step %c1_i32  : i32 {
      %43 = arith.addi %0, %arg19 : i32
      %44 = arith.index_cast %43 : i32 to index
      %45 = memref.load %arg1[%44] : memref<8xi32, #tpu.memory_space<smem>>
      %c0_i32_38 = arith.constant 0 : i32
      %c0_i32_39 = arith.constant 0 : i32
      %46 = tpu.memref_slice %arg3[%45, %c0_i32_39] : memref<32x32xf32, #tpu.memory_space<any>> -> memref<1x32xf32, #tpu.memory_space<any>>
      %47 = tpu.memref_squeeze %46 : memref<1x32xf32, #tpu.memory_space<any>> -> memref<32xf32, #tpu.memory_space<any>>
      %c0_i32_40 = arith.constant 0 : i32
      %48 = tpu.memref_slice %arg16[%arg19, %c0_i32_40] : memref<8x32xf32, #tpu.memory_space<vmem>> -> memref<1x32xf32, #tpu.memory_space<vmem>>
      %49 = tpu.memref_squeeze %48 : memref<1x32xf32, #tpu.memory_space<vmem>> -> memref<32xf32, #tpu.memory_space<vmem>>
      %50 = tpu.memref_slice %arg18[%c0_i32_38] : memref<2x!tpu.dma_semaphore, #tpu.memory_space<semaphore_mem>> -> memref<1x!tpu.dma_semaphore, #tpu.memory_space<semaphore_mem>>
      %51 = tpu.memref_squeeze %50 : memref<1x!tpu.dma_semaphore, #tpu.memory_space<semaphore_mem>> -> memref<!tpu.dma_semaphore, #tpu.memory_space<semaphore_mem>>
      tpu.enqueue_dma source(%47 : memref<32xf32, #tpu.memory_space<any>>) target(%49 : memref<32xf32, #tpu.memory_space<vmem>>) target_semaphore(%51 : memref<!tpu.dma_semaphore, #tpu.memory_space<semaphore_mem>>)
      %52 = arith.addi %0, %arg19 : i32
      %53 = arith.index_cast %52 : i32 to index
      %54 = memref.load %arg2[%53] : memref<8xi32, #tpu.memory_space<smem>>
      %c1_i32_41 = arith.constant 1 : i32
      %c0_i32_42 = arith.constant 0 : i32
      %55 = tpu.memref_slice %arg4[%54, %c0_i32_42] : memref<48x32xf32, #tpu.memory_space<any>> -> memref<1x32xf32, #tpu.memory_space<any>>
      %56 = tpu.memref_squeeze %55 : memref<1x32xf32, #tpu.memory_space<any>> -> memref<32xf32, #tpu.memory_space<any>>
      %c0_i32_43 = arith.constant 0 : i32
      %57 = tpu.memref_slice %arg17[%arg19, %c0_i32_43] : memref<8x32xf32, #tpu.memory_space<vmem>> -> memref<1x32xf32, #tpu.memory_space<vmem>>
      %58 = tpu.memref_squeeze %57 : memref<1x32xf32, #tpu.memory_space<vmem>> -> memref<32xf32, #tpu.memory_space<vmem>>
      %59 = tpu.memref_slice %arg18[%c1_i32_41] : memref<2x!tpu.dma_semaphore, #tpu.memory_space<semaphore_mem>> -> memref<1x!tpu.dma_semaphore, #tpu.memory_space<semaphore_mem>>
      %60 = tpu.memref_squeeze %59 : memref<1x!tpu.dma_semaphore, #tpu.memory_space<semaphore_mem>> -> memref<!tpu.dma_semaphore, #tpu.memory_space<semaphore_mem>>
      tpu.enqueue_dma source(%56 : memref<32xf32, #tpu.memory_space<any>>) target(%58 : memref<32xf32, #tpu.memory_space<vmem>>) target_semaphore(%60 : memref<!tpu.dma_semaphore, #tpu.memory_space<semaphore_mem>>)
    }
    %c8_i32_1 = arith.constant 8 : i32
    %c0_i32_2 = arith.constant 0 : i32
    %c8_i32_3 = arith.constant 8 : i32
    %2 = arith.addi %c0_i32_2, %c8_i32_3 : i32
    %c1_i32_4 = arith.constant 1 : i32
    scf.for %arg19 = %c0_i32_2 to %2 step %c1_i32_4  : i32 {
      %c0_i32_38 = arith.constant 0 : i32
      %c0_i32_39 = arith.constant 0 : i32
      %c0_i32_40 = arith.constant 0 : i32
      %43 = tpu.memref_slice %arg3[%c0_i32_38, %c0_i32_40] : memref<32x32xf32, #tpu.memory_space<any>> -> memref<1x32xf32, #tpu.memory_space<any>>
      %44 = tpu.memref_squeeze %43 : memref<1x32xf32, #tpu.memory_space<any>> -> memref<32xf32, #tpu.memory_space<any>>
      %c0_i32_41 = arith.constant 0 : i32
      %45 = tpu.memref_slice %arg16[%arg19, %c0_i32_41] : memref<8x32xf32, #tpu.memory_space<vmem>> -> memref<1x32xf32, #tpu.memory_space<vmem>>
      %46 = tpu.memref_squeeze %45 : memref<1x32xf32, #tpu.memory_space<vmem>> -> memref<32xf32, #tpu.memory_space<vmem>>
      %47 = tpu.memref_slice %arg18[%c0_i32_39] : memref<2x!tpu.dma_semaphore, #tpu.memory_space<semaphore_mem>> -> memref<1x!tpu.dma_semaphore, #tpu.memory_space<semaphore_mem>>
      %48 = tpu.memref_squeeze %47 : memref<1x!tpu.dma_semaphore, #tpu.memory_space<semaphore_mem>> -> memref<!tpu.dma_semaphore, #tpu.memory_space<semaphore_mem>>
      tpu.wait_dma2 semaphore(%48 : memref<!tpu.dma_semaphore, #tpu.memory_space<semaphore_mem>>) src(%44 : memref<32xf32, #tpu.memory_space<any>>) dst(%46 : memref<32xf32, #tpu.memory_space<vmem>>)
      %c0_i32_42 = arith.constant 0 : i32
      %c1_i32_43 = arith.constant 1 : i32
      %c0_i32_44 = arith.constant 0 : i32
      %49 = tpu.memref_slice %arg4[%c0_i32_42, %c0_i32_44] : memref<48x32xf32, #tpu.memory_space<any>> -> memref<1x32xf32, #tpu.memory_space<any>>
      %50 = tpu.memref_squeeze %49 : memref<1x32xf32, #tpu.memory_space<any>> -> memref<32xf32, #tpu.memory_space<any>>
      %c0_i32_45 = arith.constant 0 : i32
      %51 = tpu.memref_slice %arg17[%arg19, %c0_i32_45] : memref<8x32xf32, #tpu.memory_space<vmem>> -> memref<1x32xf32, #tpu.memory_space<vmem>>
      %52 = tpu.memref_squeeze %51 : memref<1x32xf32, #tpu.memory_space<vmem>> -> memref<32xf32, #tpu.memory_space<vmem>>
      %53 = tpu.memref_slice %arg18[%c1_i32_43] : memref<2x!tpu.dma_semaphore, #tpu.memory_space<semaphore_mem>> -> memref<1x!tpu.dma_semaphore, #tpu.memory_space<semaphore_mem>>
      %54 = tpu.memref_squeeze %53 : memref<1x!tpu.dma_semaphore, #tpu.memory_space<semaphore_mem>> -> memref<!tpu.dma_semaphore, #tpu.memory_space<semaphore_mem>>
      tpu.wait_dma2 semaphore(%54 : memref<!tpu.dma_semaphore, #tpu.memory_space<semaphore_mem>>) src(%50 : memref<32xf32, #tpu.memory_space<any>>) dst(%52 : memref<32xf32, #tpu.memory_space<vmem>>)
    }
    %c8_i32_5 = arith.constant 8 : i32
    %c0 = arith.constant 0 : index
    %c0_6 = arith.constant 0 : index
    %3 = vector.load %arg16[%c0, %c0_6] : memref<8x32xf32, #tpu.memory_space<vmem>>, vector<8x32xf32>
    %c0_7 = arith.constant 0 : index
    %c0_8 = arith.constant 0 : index
    %4 = vector.load %arg17[%c0_7, %c0_8] : memref<8x32xf32, #tpu.memory_space<vmem>>, vector<8x32xf32>
    %c0_9 = arith.constant 0 : index
    %c0_10 = arith.constant 0 : index
    %5 = vector.load %arg5[%c0_9, %c0_10] : memref<32x32xf32, #tpu.memory_space<vmem>>, vector<32x32xf32>
    %c0_11 = arith.constant 0 : index
    %c0_12 = arith.constant 0 : index
    %6 = vector.load %arg6[%c0_11, %c0_12] : memref<32x32xf32, #tpu.memory_space<vmem>>, vector<32x32xf32>
    %c0_13 = arith.constant 0 : index
    %c0_14 = arith.constant 0 : index
    %7 = vector.load %arg7[%c0_13, %c0_14] : memref<1x32xf32, #tpu.memory_space<vmem>>, vector<1x32xf32>
    %cst = arith.constant dense<0.000000e+00> : vector<8x32xf32>
    %8 = tpu.matmul %3, %5, %cst {dimension_numbers = #tpu.dot_dimension_numbers<[1], [0], [0], [1], [0, 0, 1, 1], [], []>} : vector<8x32xf32>, vector<32x32xf32>, vector<8x32xf32> -> vector<8x32xf32>
    %cst_15 = arith.constant dense<0.000000e+00> : vector<8x32xf32>
    %9 = tpu.matmul %4, %6, %cst_15 {dimension_numbers = #tpu.dot_dimension_numbers<[1], [0], [0], [1], [0, 0, 1, 1], [], []>} : vector<8x32xf32>, vector<32x32xf32>, vector<8x32xf32> -> vector<8x32xf32>
    %10 = arith.addf %8, %9 : vector<8x32xf32>
    %11 = vector.broadcast %7 : vector<1x32xf32> to vector<8x32xf32>
    %12 = arith.addf %10, %11 : vector<8x32xf32>
    %cst_16 = arith.constant 0.000000e+00 : f32
    %13 = vector.broadcast %cst_16 : f32 to vector<8x32xf32>
    %14 = arith.maximumf %12, %13 : vector<8x32xf32>
    %c0_17 = arith.constant 0 : index
    %c0_18 = arith.constant 0 : index
    %15 = vector.load %arg8[%c0_17, %c0_18] : memref<32x16xf32, #tpu.memory_space<vmem>>, vector<32x16xf32>
    %c0_19 = arith.constant 0 : index
    %c0_20 = arith.constant 0 : index
    %16 = vector.load %arg9[%c0_19, %c0_20] : memref<1x16xf32, #tpu.memory_space<vmem>>, vector<1x16xf32>
    %cst_21 = arith.constant dense<0.000000e+00> : vector<8x16xf32>
    %17 = tpu.matmul %14, %15, %cst_21 {dimension_numbers = #tpu.dot_dimension_numbers<[1], [0], [0], [1], [0, 0, 1, 1], [], []>} : vector<8x32xf32>, vector<32x16xf32>, vector<8x16xf32> -> vector<8x16xf32>
    %18 = vector.broadcast %16 : vector<1x16xf32> to vector<8x16xf32>
    %19 = arith.addf %17, %18 : vector<8x16xf32>
    %cst_22 = arith.constant 0.000000e+00 : f32
    %20 = vector.broadcast %cst_22 : f32 to vector<8x16xf32>
    %21 = arith.maximumf %19, %20 : vector<8x16xf32>
    %c0_23 = arith.constant 0 : index
    %c0_24 = arith.constant 0 : index
    %22 = vector.load %arg10[%c0_23, %c0_24] : memref<16x128xf32, #tpu.memory_space<vmem>>, vector<16x128xf32>
    %c0_25 = arith.constant 0 : index
    %c0_26 = arith.constant 0 : index
    %23 = vector.load %arg11[%c0_25, %c0_26] : memref<1x128xf32, #tpu.memory_space<vmem>>, vector<1x128xf32>
    %c0_27 = arith.constant 0 : index
    %c0_28 = arith.constant 0 : index
    %24 = vector.load %arg12[%c0_27, %c0_28] : memref<1x128xf32, #tpu.memory_space<vmem>>, vector<1x128xf32>
    %c0_29 = arith.constant 0 : index
    %c0_30 = arith.constant 0 : index
    %25 = vector.load %arg13[%c0_29, %c0_30] : memref<1x1xf32, #tpu.memory_space<vmem>>, vector<1x1xf32>
    %c0_31 = arith.constant 0 : index
    %c0_32 = arith.constant 0 : index
    %26 = vector.load %arg14[%c0_31, %c0_32] : memref<1x128xf32, #tpu.memory_space<vmem>>, vector<1x128xf32>
    %cst_33 = arith.constant dense<0.000000e+00> : vector<8x128xf32>
    %27 = tpu.matmul %21, %22, %cst_33 {dimension_numbers = #tpu.dot_dimension_numbers<[1], [0], [0], [1], [0, 0, 1, 1], [], []>} : vector<8x16xf32>, vector<16x128xf32>, vector<8x128xf32> -> vector<8x128xf32>
    %28 = vector.broadcast %23 : vector<1x128xf32> to vector<8x128xf32>
    %29 = arith.addf %27, %28 : vector<8x128xf32>
    %cst_34 = arith.constant 0.000000e+00 : f32
    %30 = vector.broadcast %cst_34 : f32 to vector<8x128xf32>
    %31 = arith.maximumf %29, %30 : vector<8x128xf32>
    %32 = vector.broadcast %24 : vector<1x128xf32> to vector<8x128xf32>
    %33 = arith.mulf %31, %32 : vector<8x128xf32>
    %cst_35 = arith.constant dense<0.000000e+00> : vector<8xf32>
    %34 = vector.multi_reduction <add>, %33, %cst_35 [1] : vector<8x128xf32> to vector<8xf32>
    %35 = vector.shape_cast %34 : vector<8xf32> to vector<8x1xf32>
    %36 = vector.broadcast %25 : vector<1x1xf32> to vector<8x1xf32>
    %37 = arith.addf %35, %36 : vector<8x1xf32>
    %38 = vector.broadcast %37 : vector<8x1xf32> to vector<8x128xf32>
    %39 = vector.broadcast %26 : vector<1x128xf32> to vector<8x128xf32>
    %40 = arith.mulf %38, %39 : vector<8x128xf32>
    %41 = arith.addf %29, %40 : vector<8x128xf32>
    %c0_36 = arith.constant 0 : index
    %c0_37 = arith.constant 0 : index
    %42 = vector.load %arg15[%c0_36, %c0_37] : memref<8x128xf32, #tpu.memory_space<vmem>>, vector<8x128xf32>
    tpu.vector_store %arg15[%c0_36, %c0_37], %41 {strides = array<i32>} : memref<8x128xf32, #tpu.memory_space<vmem>>, vector<8x128xf32>,
    return
  }
  func.func @transform_2(%arg0: i32, %arg1: memref<8xi32, #tpu.memory_space<smem>>, %arg2: memref<8xi32, #tpu.memory_space<smem>>) -> (i32, i32) {
    %c0_i32 = arith.constant 0 : i32
    %c0_i32_0 = arith.constant 0 : i32
    %c0_i32_1 = arith.constant 0 : i32
    return %c0_i32, %c0_i32_0 : i32, i32
  }
  func.func @transform_3(%arg0: i32, %arg1: memref<8xi32, #tpu.memory_space<smem>>, %arg2: memref<8xi32, #tpu.memory_space<smem>>) -> (i32, i32) {
    %c0_i32 = arith.constant 0 : i32
    %c0_i32_0 = arith.constant 0 : i32
    %c0_i32_1 = arith.constant 0 : i32
    return %c0_i32, %c0_i32_0 : i32, i32
  }
  func.func @transform_4(%arg0: i32, %arg1: memref<8xi32, #tpu.memory_space<smem>>, %arg2: memref<8xi32, #tpu.memory_space<smem>>) -> (i32, i32) {
    %c0_i32 = arith.constant 0 : i32
    %c0_i32_0 = arith.constant 0 : i32
    %c0_i32_1 = arith.constant 0 : i32
    return %c0_i32, %c0_i32_0 : i32, i32
  }
  func.func @transform_5(%arg0: i32, %arg1: memref<8xi32, #tpu.memory_space<smem>>, %arg2: memref<8xi32, #tpu.memory_space<smem>>) -> (i32, i32) {
    %c0_i32 = arith.constant 0 : i32
    %c0_i32_0 = arith.constant 0 : i32
    %c0_i32_1 = arith.constant 0 : i32
    return %c0_i32, %c0_i32_0 : i32, i32
  }
  func.func @transform_6(%arg0: i32, %arg1: memref<8xi32, #tpu.memory_space<smem>>, %arg2: memref<8xi32, #tpu.memory_space<smem>>) -> (i32, i32) {
    %c0_i32 = arith.constant 0 : i32
    %c0_i32_0 = arith.constant 0 : i32
    %c0_i32_1 = arith.constant 0 : i32
    return %c0_i32, %c0_i32_0 : i32, i32
  }
  func.func @transform_7(%arg0: i32, %arg1: memref<8xi32, #tpu.memory_space<smem>>, %arg2: memref<8xi32, #tpu.memory_space<smem>>) -> (i32, i32) {
    %c0_i32 = arith.constant 0 : i32
    %c0_i32_0 = arith.constant 0 : i32
    %c0_i32_1 = arith.constant 0 : i32
    return %c0_i32, %c0_i32_0 : i32, i32
  }
  func.func @transform_8(%arg0: i32, %arg1: memref<8xi32, #tpu.memory_space<smem>>, %arg2: memref<8xi32, #tpu.memory_space<smem>>) -> (i32, i32) {
    %c0_i32 = arith.constant 0 : i32
    %c0_i32_0 = arith.constant 0 : i32
    %c0_i32_1 = arith.constant 0 : i32
    return %c0_i32, %c0_i32_0 : i32, i32
  }
  func.func @transform_9(%arg0: i32, %arg1: memref<8xi32, #tpu.memory_space<smem>>, %arg2: memref<8xi32, #tpu.memory_space<smem>>) -> (i32, i32) {
    %c0_i32 = arith.constant 0 : i32
    %c0_i32_0 = arith.constant 0 : i32
    %c0_i32_1 = arith.constant 0 : i32
    return %c0_i32, %c0_i32_0 : i32, i32
  }
  func.func @transform_10(%arg0: i32, %arg1: memref<8xi32, #tpu.memory_space<smem>>, %arg2: memref<8xi32, #tpu.memory_space<smem>>) -> (i32, i32) {
    %c0_i32 = arith.constant 0 : i32
    %c0_i32_0 = arith.constant 0 : i32
    %c0_i32_1 = arith.constant 0 : i32
    return %c0_i32, %c0_i32_0 : i32, i32
  }
  func.func @transform_11(%arg0: i32, %arg1: memref<8xi32, #tpu.memory_space<smem>>, %arg2: memref<8xi32, #tpu.memory_space<smem>>) -> (i32, i32) {
    %c0_i32 = arith.constant 0 : i32
    %c0_i32_0 = arith.constant 0 : i32
    %c0_i32_1 = arith.constant 0 : i32
    return %c0_i32, %c0_i32_0 : i32, i32
  }
  func.func @transform_12(%arg0: i32, %arg1: memref<8xi32, #tpu.memory_space<smem>>, %arg2: memref<8xi32, #tpu.memory_space<smem>>) -> (i32, i32) {
    %c0_i32 = arith.constant 0 : i32
    %c0_i32_0 = arith.constant 0 : i32
    return %arg0, %c0_i32 : i32, i32
  }
}

</mosaic_0001>

<llo_original>
// kernel: tpu_custom_call.1
$region0: #{tpu_custom_call.1}
  #allocation0 [shape = 'u32[]', space=smem, size = 0x4, offset = 0x4, fixed_abs, tag = 'smem constant byte address 0x4 - core index']
  #allocation1 [shape = 'u32[144,128]{1,0:T(1,128)}', space=vmem, size = 0x12000, scoped, tag = 'internal scratch']
  #allocation2 [shape = 'f32[8,32]{1,0:T(8,128)}', space=vmem, size = 0x1000, scoped, tag = 'scratch operand']
  #allocation3 [shape = 'f32[8,32]{1,0:T(8,128)}', space=vmem, size = 0x1000, scoped, tag = 'scratch operand']
  #allocation4 [shape = 's32[2]{0}', space=sflag, size = 0x8, scoped, tag = 'scratch operand']
  #allocation5 [shape = 's32[1]{0}', space=sflag, size = 0x4, scoped, tag = 'scoped memory for tpu_custom_call.1']
  #allocation6 [shape = 'u8[512]{0}', space=smem, size = 0x200, scoped, tag = 'prefetched SMEM operand 0']
  #allocation7 [shape = 'u8[512]{0}', space=smem, size = 0x200, scoped, tag = 'prefetched SMEM operand 1']
  #allocation8 [shape = 'f32[1,1]{1,0:T(1,128)S(1)}', space=vmem, size = 0x200, scoped, tag = 'scoped memory for tpu_custom_call.1']
  #allocation15 [shape = 's32[]', space=sflag, size = 0x4, offset = 0, fixed_abs, tag = 'sflag constant byte address 0x0 - dummy sync flag']
  #allocation16 [shape = 's32[]', space=sflag, size = 0x4, offset = 0, fixed_abs, tag = 'sflag constant byte address 0x0 - dummy sync flag']
  %s0 = inlined_call_operand.vmem [shape: s32[8], index: 0, kind: input, shape index: {}]
  %s1 = inlined_call_operand.vmem [shape: s32[8], index: 1, kind: input, shape index: {}]
  %s2 = inlined_call_operand.vmem [shape: f32[32,32], index: 2, kind: input, shape index: {}]
  %s3 = inlined_call_operand.vmem [shape: f32[48,32], index: 3, kind: input, shape index: {}]
  %s4 = inlined_call_operand.vmem [shape: f32[32,32], index: 4, kind: input, shape index: {}]
  %s5 = inlined_call_operand.vmem [shape: f32[32,32], index: 5, kind: input, shape index: {}]
  %s6 = inlined_call_operand.hbm [shape: f32[1,32], index: 6, kind: input, shape index: {}]
  %s7 = inlined_call_operand.vmem [shape: f32[32,16], index: 7, kind: input, shape index: {}]
  %s8 = inlined_call_operand.hbm [shape: f32[1,16], index: 8, kind: input, shape index: {}]
  %s9 = inlined_call_operand.vmem [shape: f32[16,128], index: 9, kind: input, shape index: {}]
  %s10 = inlined_call_operand.vmem [shape: f32[1,128], index: 10, kind: input, shape index: {}]
  %s11 = inlined_call_operand.vmem [shape: f32[1,128], index: 11, kind: input, shape index: {}]
  %s12 = inlined_call_operand.<no memory space> [shape: f32[1,1], index: 12, kind: input, shape index: {}]
  %s13 = inlined_call_operand.vmem [shape: f32[1,128], index: 13, kind: input, shape index: {}]
  %s14 = inlined_call_operand.hbm [shape: f32[8,128], index: 14, kind: output, shape index: {}]
  %s15 = sld [smem:[#allocation0]]
  $region132: #{tpu_custom_call.1} parent=0
    _
  %s17 = ssub.s32 1, %s15
  %s18 = scalar_select 0, %s17, %s15
  %s19 = sshll.u32 %s0, 4
  %s20 = int_to_ptr.vmem [resolvable:$true] %s19
  %22 = dma.vmem_to_smem %s20, 16, [#allocation6], [#allocation5]
  %s23 = sshll.u32 %s1, 4
  %s24 = int_to_ptr.vmem [resolvable:$true] %s23
  %26 = dma.vmem_to_smem %s24, 16, [#allocation7], [#allocation5]
  %v27 = vstv %s12
  %28 = vst [vmem:[#allocation8] sm:$0x1] %v27
  %29 = dma.done [#allocation5], 32
  %30 = sfence
  $region1: #{tpu_custom_call.1} parent=0
    #allocation9 [shape = 'u8[512]{0}', space=vmem, size = 0x400, scoped, tag = 'input window, operand 6, single buffered']
    #allocation10 [shape = 's32[1]{0}', space=sflag, size = 0x4, scoped, tag = 'scoped memory for tpu_custom_call.1']
    #allocation11 [shape = 's32[1]{0}', space=sflag, size = 0x4, scoped, tag = 'scoped memory for tpu_custom_call.1']
    #allocation12 [shape = 'u8[512]{0}', space=vmem, size = 0x400, scoped, tag = 'input window, operand 8, single buffered']
    #allocation13 [shape = 's32[1]{0}', space=sflag, size = 0x4, scoped, tag = 'scoped memory for tpu_custom_call.1']
    #allocation14 [shape = 'u8[4096]{0}', space=vmem, size = 0x1000, scoped, tag = 'output window, operand 0, single buffered']
    %31 = vsyncpa [#allocation10], 0
    %32 = vsyncpa [#allocation13], 0
    %33 = vsyncpa [#allocation11], 0
    // Predicated region
    $region2: #{tpu_custom_call.1} parent=1 // pred_check
      _
    $region3: #{tpu_custom_call.1} parent=1 // pred_check_branch
      %35 = sbr.rel (0) target = $region5
    $region4: #{tpu_custom_call.1} parent=1 // pred_region
      _
    $region5: #{tpu_custom_call.1} parent=1 // pred_fallthru
      _
    // Predicated region
    $region6: #{tpu_custom_call.1} parent=1 // pred_check
      _
    $region7: #{tpu_custom_call.1} parent=1 // pred_check_branch
      %37 = sbr.rel (0) target = $region9
    $region8: #{tpu_custom_call.1} parent=1 // pred_region
      _
    $region9: #{tpu_custom_call.1} parent=1 // pred_fallthru
      _
    // Predicated region
    $region10: #{tpu_custom_call.1} parent=1 // pred_check
      _
    $region11: #{tpu_custom_call.1} parent=1 // pred_check_branch
      %39 = sbr.rel (0) target = $region13
    $region12: #{tpu_custom_call.1} parent=1 // pred_region
      %s41 = ssub.s32 16, 16
      %42 = vsyncadd [#allocation10], %s41
      %s44 = sshll.u32 [#allocation9], 4
      %s45 = int_to_ptr.vmem [resolvable:$true] %s44
      %47 = dma.hbm_to_vmem [thread:$0]  %s6, 16, %s45, [#allocation10]
    $region13: #{tpu_custom_call.1} parent=1 // pred_fallthru
      _
    // Predicated region
    $region14: #{tpu_custom_call.1} parent=1 // pred_check
      _
    $region15: #{tpu_custom_call.1} parent=1 // pred_check_branch
      %49 = sbr.rel (0) target = $region17
    $region16: #{tpu_custom_call.1} parent=1 // pred_region
      _
    $region17: #{tpu_custom_call.1} parent=1 // pred_fallthru
      _
    // Predicated region
    $region18: #{tpu_custom_call.1} parent=1 // pred_check
      _
    $region19: #{tpu_custom_call.1} parent=1 // pred_check_branch
      %51 = sbr.rel (0) target = $region21
    $region20: #{tpu_custom_call.1} parent=1 // pred_region
      %s53 = ssub.s32 16, 16
      %54 = vsyncadd [#allocation13], %s53
      %s56 = sshll.u32 [#allocation12], 4
      %s57 = int_to_ptr.vmem [resolvable:$true] %s56
      %59 = dma.hbm_to_vmem [thread:$0]  %s8, 16, %s57, [#allocation13]
    $region21: #{tpu_custom_call.1} parent=1 // pred_fallthru
      _
    // Predicated region
    $region22: #{tpu_custom_call.1} parent=1 // pred_check
      _
    $region23: #{tpu_custom_call.1} parent=1 // pred_check_branch
      %61 = sbr.rel (0) target = $region25
    $region24: #{tpu_custom_call.1} parent=1 // pred_region
      _
    $region25: #{tpu_custom_call.1} parent=1 // pred_fallthru
      _
    // Predicated region
    $region26: #{tpu_custom_call.1} parent=1 // pred_check
      _
    $region27: #{tpu_custom_call.1} parent=1 // pred_check_branch
      %63 = sbr.rel (0) target = $region29
    $region28: #{tpu_custom_call.1} parent=1 // pred_region
      _
    $region29: #{tpu_custom_call.1} parent=1 // pred_fallthru
      _
    // Predicated region
    $region30: #{tpu_custom_call.1} parent=1 // pred_check
      _
    $region31: #{tpu_custom_call.1} parent=1 // pred_check_branch
      %65 = sbr.rel (0) target = $region33
    $region32: #{tpu_custom_call.1} parent=1 // pred_region
      _
    $region33: #{tpu_custom_call.1} parent=1 // pred_fallthru
      _
    // Predicated region
    $region34: #{tpu_custom_call.1} parent=1 // pred_check
      _
    $region35: #{tpu_custom_call.1} parent=1 // pred_check_branch
      %67 = sbr.rel (0) target = $region37
    $region36: #{tpu_custom_call.1} parent=1 // pred_region
      _
    $region37: #{tpu_custom_call.1} parent=1 // pred_fallthru
      _
    // Predicated region
    $region38: #{tpu_custom_call.1} parent=1 // pred_check
      _
    $region39: #{tpu_custom_call.1} parent=1 // pred_check_branch
      %69 = sbr.rel (0) target = $region41
    $region40: #{tpu_custom_call.1} parent=1 // pred_region
      _
    $region41: #{tpu_custom_call.1} parent=1 // pred_fallthru
      _
    // Predicated region
    $region42: #{tpu_custom_call.1} parent=1 // pred_check
      _
    $region43: #{tpu_custom_call.1} parent=1 // pred_check_branch
      %71 = sbr.rel (0) target = $region45
    $region44: #{tpu_custom_call.1} parent=1 // pred_region
      %72 = dma.done [#allocation10], 16
    $region45: #{tpu_custom_call.1} parent=1 // pred_fallthru
      _
    // Predicated region
    $region46: #{tpu_custom_call.1} parent=1 // pred_check
      _
    $region47: #{tpu_custom_call.1} parent=1 // pred_check_branch
      %74 = sbr.rel (0) target = $region49
    $region48: #{tpu_custom_call.1} parent=1 // pred_region
      %75 = dma.done [#allocation13], 16
    $region49: #{tpu_custom_call.1} parent=1 // pred_fallthru
      _
    %s76 = smul.u32 0, 8
    loop: start=0, step=1, limit=8
    $region50: #{tpu_custom_call.1} parent=1 // loop_pre_header
      _
    $region51: #{tpu_custom_call.1} parent=1 // loop_header
      %s78 = sphi 0, %s82
      %p79 = scmp.ge.s32.totalorder %s78, 8
    $region52: #{tpu_custom_call.1} parent=1 // loop_header_branch
      %81 = sbr.rel (%p79) target = $region56
    $region53: #{tpu_custom_call.1} parent=1 // loop_body
      %s83 = sadd.s32 %s76, %s78
      %s84 = sld [smem:[#allocation6 + %s83]]
      %s85 = scalar_lea.vmem %s2, %s84
      %s86 = scalar_lea.vmem [#allocation2], %s78
      %p88 = scmp.lt.u32.totalorder 1, 8
      %p89 = pneg %p88
      // Predicated region
      $region57: #{tpu_custom_call.1} parent=53 // pred_check
        _
      $region58: #{tpu_custom_call.1} parent=53 // pred_check_branch
        %91 = sbr.rel (%p88) target = $region60
      $region59: #{tpu_custom_call.1} parent=53 // pred_region
        %s106 = sand.u32 1, 7
        %p107 = scmp.eq.s32.totalorder %s106, 0
        %p108 = pneg %p107
        // Predicated region
        $region72: #{tpu_custom_call.1} parent=59 // pred_check
          _
        $region73: #{tpu_custom_call.1} parent=59 // pred_check_branch
          %110 = sbr.rel (%p107) target = $region75
        $region74: #{tpu_custom_call.1} parent=59 // pred_region
          %s111 = sand.u32 1, 7
          %s112 = ssub.s32 1, %s111
          %s113 = scalar_lea.vmem %s85, %s112
          %s114 = ssub.s32 1, %s111
          %s115 = scalar_lea.vmem %s86, %s114 [#allocation2]
          %s116 = sshllo.u32 0, %s111
          loop: start=0, step=1, limit=1
          $region76: #{tpu_custom_call.1} parent=74 // loop_pre_header
            _
          $region77: #{tpu_custom_call.1} parent=74 // loop_header
            %s118 = sphi 0, %s122
            %p119 = scmp.ge.s32.totalorder %s118, 1
            %s123 = sphi %s113, %s113
            %s124 = sphi %s115, %s115
          $region78: #{tpu_custom_call.1} parent=74 // loop_header_branch
            %121 = sbr.rel (%p119) target = $region82
          $region79: #{tpu_custom_call.1} parent=74 // loop_body
            %v125 = vld [vmem:[%s123] sm:%s116]
            %126 = vst [vmem:[%s124] sm:%s116] %v125
          $region80: #{tpu_custom_call.1} parent=74 // loop_footer
            %s122 = sadd.s32 1, %s118
          $region81: #{tpu_custom_call.1} parent=74 // loop_footer_branch
            %117 = sbr.rel target = $region77
          $region82: #{tpu_custom_call.1} parent=74 // loop_exit
            _
        $region75: #{tpu_custom_call.1} parent=59 // pred_fallthru
          _
      $region60: #{tpu_custom_call.1} parent=53 // pred_fallthru
        _
      // Predicated region
      $region61: #{tpu_custom_call.1} parent=53 // pred_check
        %p92 = pneg %p88
      $region62: #{tpu_custom_call.1} parent=53 // pred_check_branch
        %94 = sbr.rel (%p92) target = $region64
      $region63: #{tpu_custom_call.1} parent=53 // pred_region
        %s95 = sshllo.u32 0, 1
        loop: start=0, step=1, limit=1
        $region65: #{tpu_custom_call.1} parent=63 // loop_pre_header
          _
        $region66: #{tpu_custom_call.1} parent=63 // loop_header
          %s97 = sphi 0, %s101
          %p98 = scmp.ge.s32.totalorder %s97, 1
          %s102 = sphi %s85, %s85
          %s103 = sphi %s86, %s86
        $region67: #{tpu_custom_call.1} parent=63 // loop_header_branch
          %100 = sbr.rel (%p98) target = $region71
        $region68: #{tpu_custom_call.1} parent=63 // loop_body
          %v104 = vld [vmem:[%s102] sm:%s95]
          %105 = vst [vmem:[%s103] sm:%s95] %v104
        $region69: #{tpu_custom_call.1} parent=63 // loop_footer
          %s101 = sadd.s32 1, %s97
        $region70: #{tpu_custom_call.1} parent=63 // loop_footer_branch
          %96 = sbr.rel target = $region66
        $region71: #{tpu_custom_call.1} parent=63 // loop_exit
          _
      $region64: #{tpu_custom_call.1} parent=53 // pred_fallthru
        _
      // Predicated region
      $region83: #{tpu_custom_call.1} parent=53 // pred_check
        _
      $region84: #{tpu_custom_call.1} parent=53 // pred_check_branch
        %129 = sbr.rel (0) target = $region86
      $region85: #{tpu_custom_call.1} parent=53 // pred_region
        %130 = vsyncadd [#allocation4], 16
      $region86: #{tpu_custom_call.1} parent=53 // pred_fallthru
        _
      %s131 = sld [smem:[#allocation7 + %s83]]
      %s132 = scalar_lea.vmem %s3, %s131
      %s133 = scalar_lea.vmem [#allocation3], %s78
      %s134 = scalar_lea.sflag [#allocation4], 1
      %p136 = scmp.lt.u32.totalorder 1, 8
      %p137 = pneg %p136
      // Predicated region
      $region87: #{tpu_custom_call.1} parent=53 // pred_check
        _
      $region88: #{tpu_custom_call.1} parent=53 // pred_check_branch
        %139 = sbr.rel (%p136) target = $region90
      $region89: #{tpu_custom_call.1} parent=53 // pred_region
        %s154 = sand.u32 1, 7
        %p155 = scmp.eq.s32.totalorder %s154, 0
        %p156 = pneg %p155
        // Predicated region
        $region102: #{tpu_custom_call.1} parent=89 // pred_check
          _
        $region103: #{tpu_custom_call.1} parent=89 // pred_check_branch
          %158 = sbr.rel (%p155) target = $region105
        $region104: #{tpu_custom_call.1} parent=89 // pred_region
          %s159 = sand.u32 1, 7
          %s160 = ssub.s32 1, %s159
          %s161 = scalar_lea.vmem %s132, %s160
          %s162 = ssub.s32 1, %s159
          %s163 = scalar_lea.vmem %s133, %s162 [#allocation3]
          %s164 = sshllo.u32 0, %s159
          loop: start=0, step=1, limit=1
          $region106: #{tpu_custom_call.1} parent=104 // loop_pre_header
            _
          $region107: #{tpu_custom_call.1} parent=104 // loop_header
            %s166 = sphi 0, %s170
            %p167 = scmp.ge.s32.totalorder %s166, 1
            %s171 = sphi %s161, %s161
            %s172 = sphi %s163, %s163
          $region108: #{tpu_custom_call.1} parent=104 // loop_header_branch
            %169 = sbr.rel (%p167) target = $region112
          $region109: #{tpu_custom_call.1} parent=104 // loop_body
            %v173 = vld [vmem:[%s171] sm:%s164]
            %174 = vst [vmem:[%s172] sm:%s164] %v173
          $region110: #{tpu_custom_call.1} parent=104 // loop_footer
            %s170 = sadd.s32 1, %s166
          $region111: #{tpu_custom_call.1} parent=104 // loop_footer_branch
            %165 = sbr.rel target = $region107
          $region112: #{tpu_custom_call.1} parent=104 // loop_exit
            _
        $region105: #{tpu_custom_call.1} parent=89 // pred_fallthru
          _
      $region90: #{tpu_custom_call.1} parent=53 // pred_fallthru
        _
      // Predicated region
      $region91: #{tpu_custom_call.1} parent=53 // pred_check
        %p140 = pneg %p136
      $region92: #{tpu_custom_call.1} parent=53 // pred_check_branch
        %142 = sbr.rel (%p140) target = $region94
      $region93: #{tpu_custom_call.1} parent=53 // pred_region
        %s143 = sshllo.u32 0, 1
        loop: start=0, step=1, limit=1
        $region95: #{tpu_custom_call.1} parent=93 // loop_pre_header
          _
        $region96: #{tpu_custom_call.1} parent=93 // loop_header
          %s145 = sphi 0, %s149
          %p146 = scmp.ge.s32.totalorder %s145, 1
          %s150 = sphi %s132, %s132
          %s151 = sphi %s133, %s133
        $region97: #{tpu_custom_call.1} parent=93 // loop_header_branch
          %148 = sbr.rel (%p146) target = $region101
        $region98: #{tpu_custom_call.1} parent=93 // loop_body
          %v152 = vld [vmem:[%s150] sm:%s143]
          %153 = vst [vmem:[%s151] sm:%s143] %v152
        $region99: #{tpu_custom_call.1} parent=93 // loop_footer
          %s149 = sadd.s32 1, %s145
        $region100: #{tpu_custom_call.1} parent=93 // loop_footer_branch
          %144 = sbr.rel target = $region96
        $region101: #{tpu_custom_call.1} parent=93 // loop_exit
          _
      $region94: #{tpu_custom_call.1} parent=53 // pred_fallthru
        _
      // Predicated region
      $region113: #{tpu_custom_call.1} parent=53 // pred_check
        _
      $region114: #{tpu_custom_call.1} parent=53 // pred_check_branch
        %177 = sbr.rel (0) target = $region116
      $region115: #{tpu_custom_call.1} parent=53 // pred_region
        %178 = vsyncadd %s134, 16
      $region116: #{tpu_custom_call.1} parent=53 // pred_fallthru
        _
    $region54: #{tpu_custom_call.1} parent=1 // loop_footer
      %s82 = sadd.s32 1, %s78
    $region55: #{tpu_custom_call.1} parent=1 // loop_footer_branch
      %77 = sbr.rel target = $region51
    $region56: #{tpu_custom_call.1} parent=1 // loop_exit
      _
    loop: start=0, step=1, limit=8
    $region117: #{tpu_custom_call.1} parent=1 // loop_pre_header
      _
    $region118: #{tpu_custom_call.1} parent=1 // loop_header
      %s180 = sphi 0, %s184
      %p181 = scmp.ge.s32.totalorder %s180, 8
    $region119: #{tpu_custom_call.1} parent=1 // loop_header_branch
      %183 = sbr.rel (%p181) target = $region123
    $region120: #{tpu_custom_call.1} parent=1 // loop_body
      %186 = dma.done [#allocation4], 16
      %s187 = scalar_lea.sflag [#allocation4], 1
      %189 = dma.done %s187, 16
    $region121: #{tpu_custom_call.1} parent=1 // loop_footer
      %s184 = sadd.s32 1, %s180
    $region122: #{tpu_custom_call.1} parent=1 // loop_footer_branch
      %179 = sbr.rel target = $region118
    $region123: #{tpu_custom_call.1} parent=1 // loop_exit
      _
    %v190 = vld [vmem:[#allocation2] sm:$0xff]
    %v191 = vld [vmem:[#allocation3] sm:$0xff]
    %v192 = vld [vmem:[%s4] sm:$0xff]
    %v193 = vld [vmem:[%s4 + $0x8] sm:$0xff]
    %v194 = vld [vmem:[%s4 + $0x10] sm:$0xff]
    %v195 = vld [vmem:[%s4 + $0x18] sm:$0xff]
    %v196 = vld [vmem:[%s5] sm:$0xff]
    %v197 = vld [vmem:[%s5 + $0x8] sm:$0xff]
    %v198 = vld [vmem:[%s5 + $0x10] sm:$0xff]
    %v199 = vld [vmem:[%s5 + $0x18] sm:$0xff]
    %v200 = vld [vmem:[#allocation9] sm:$0x1]
    %vm201 = vcmask 261120
    %v203 = vsel %vm201, %v191, 0
    %205 = vmatprep.subr.mxu0 0.0
    %206 = vmatpush1.msra.mxu0 %v196
    %207 = vmatprep.subr.mxu0 0.0
    %208 = vmatpush1.msra.mxu0 %v197
    %209 = vmatprep.subr.mxu0 0.0
    %210 = vmatpush1.msra.mxu0 %v198
    %211 = vmatprep.subr.mxu0 0.0
    %212 = vmatpush1.msra.mxu0 %v199
    %213 = vmatprep.subr.mxu0 0.0
    %214 = vmatpush1.msra.mxu0 0.0
    %215 = vmatprep.subr.mxu0 0.0
    %216 = vmatpush1.msra.mxu0 0.0
    %217 = vmatprep.subr.mxu0 0.0
    %218 = vmatpush1.msra.mxu0 0.0
    %219 = vmatprep.subr.mxu0 0.0
    %220 = vmatpush1.msra.mxu0 0.0
    %221 = vmatprep.subr.mxu0 0.0
    %222 = vmatpush1.msra.mxu0 0.0
    %223 = vmatprep.subr.mxu0 0.0
    %224 = vmatpush1.msra.mxu0 0.0
    %225 = vmatprep.subr.mxu0 0.0
    %226 = vmatpush1.msra.mxu0 0.0
    %227 = vmatprep.subr.mxu0 0.0
    %228 = vmatpush1.msra.mxu0 0.0
    %229 = vmatprep.subr.mxu0 0.0
    %230 = vmatpush1.msra.mxu0 0.0
    %231 = vmatprep.subr.mxu0 0.0
    %232 = vmatpush1.msra.mxu0 0.0
    %233 = vmatprep.subr.mxu0 0.0
    %234 = vmatpush1.msra.mxu0 0.0
    %235 = vmatprep.subr.mxu0 0.0
    %236 = vmatpush1.msra.mxu0 0.0
    %237 = vmatprep.subr.mxu0 0.0
    %238 = vmatpush1.msra.mxu0 0.0
    %239 = vmatprep.subr.mxu0 0.0
    %240 = vmatpush1.msra.mxu0 0.0
    %241 = vmatprep.subr.mxu0 0.0
    %242 = vmatpush1.msra.mxu0 0.0
    %243 = vmatprep.subr.mxu0 0.0
    %244 = vmatpush1.msra.mxu0 0.0
    %245 = vmatprep.subr.mxu0 0.0
    %246 = vmatpush1.msra.mxu0 0.0
    %247 = vmatprep.subr.mxu0 0.0
    %248 = vmatpush1.msra.mxu0 0.0
    %249 = vmatprep.subr.mxu0 0.0
    %250 = vmatpush1.msra.mxu0 0.0
    %251 = vmatprep.subr.mxu0 0.0
    %252 = vmatpush1.msra.mxu0 0.0
    %253 = vmatprep.subr.mxu0 0.0
    %254 = vmatpush1.msra.mxu0 0.0
    %255 = vmatprep.subr.mxu0 0.0
    %256 = vmatpush1.msra.mxu0 0.0
    %257 = vmatprep.subr.mxu0 0.0
    %258 = vmatpush1.msra.mxu0 0.0
    %259 = vmatprep.subr.mxu0 0.0
    %260 = vmatpush1.msra.mxu0 0.0
    %261 = vmatprep.subr.mxu0 0.0
    %262 = vmatpush1.msra.mxu0 0.0
    %263 = vmatprep.subr.mxu0 0.0
    %264 = vmatpush1.msra.mxu0 0.0
    %265 = vmatprep.subr.mxu0 0.0
    %266 = vmatpush1.msra.mxu0 0.0
    %267 = vmatprep.subr.mxu0 0.0
    %268 = vmatpush1.msra.mxu0 0.0
    %269 = vmatprep.mubr.f32.mxu0 0.0
    %270 = vmatmul.mubr.f32.gmra.mrb[0].mxu0 %v203
    %v271 = vpop.f32.mrb[0].mxu0
    %v272 = vadd.f32 0.0, %v271
    %v273 = vpop.f32.mrb[0].mxu0
    %274 = vdwg.mxu0
    %v276 = vsel %vm201, %v190, 0
    %278 = vmatprep.subr.mxu0 0.0
    %279 = vmatpush1.msra.mxu0 %v192
    %280 = vmatprep.subr.mxu0 0.0
    %281 = vmatpush1.msra.mxu0 %v193
    %282 = vmatprep.subr.mxu0 0.0
    %283 = vmatpush1.msra.mxu0 %v194
    %284 = vmatprep.subr.mxu0 0.0
    %285 = vmatpush1.msra.mxu0 %v195
    %286 = vmatprep.subr.mxu0 0.0
    %287 = vmatpush1.msra.mxu0 0.0
    %288 = vmatprep.subr.mxu0 0.0
    %289 = vmatpush1.msra.mxu0 0.0
    %290 = vmatprep.subr.mxu0 0.0
    %291 = vmatpush1.msra.mxu0 0.0
    %292 = vmatprep.subr.mxu0 0.0
    %293 = vmatpush1.msra.mxu0 0.0
    %294 = vmatprep.subr.mxu0 0.0
    %295 = vmatpush1.msra.mxu0 0.0
    %296 = vmatprep.subr.mxu0 0.0
    %297 = vmatpush1.msra.mxu0 0.0
    %298 = vmatprep.subr.mxu0 0.0
    %299 = vmatpush1.msra.mxu0 0.0
    %300 = vmatprep.subr.mxu0 0.0
    %301 = vmatpush1.msra.mxu0 0.0
    %302 = vmatprep.subr.mxu0 0.0
    %303 = vmatpush1.msra.mxu0 0.0
    %304 = vmatprep.subr.mxu0 0.0
    %305 = vmatpush1.msra.mxu0 0.0
    %306 = vmatprep.subr.mxu0 0.0
    %307 = vmatpush1.msra.mxu0 0.0
    %308 = vmatprep.subr.mxu0 0.0
    %309 = vmatpush1.msra.mxu0 0.0
    %310 = vmatprep.subr.mxu0 0.0
    %311 = vmatpush1.msra.mxu0 0.0
    %312 = vmatprep.subr.mxu0 0.0
    %313 = vmatpush1.msra.mxu0 0.0
    %314 = vmatprep.subr.mxu0 0.0
    %315 = vmatpush1.msra.mxu0 0.0
    %316 = vmatprep.subr.mxu0 0.0
    %317 = vmatpush1.msra.mxu0 0.0
    %318 = vmatprep.subr.mxu0 0.0
    %319 = vmatpush1.msra.mxu0 0.0
    %320 = vmatprep.subr.mxu0 0.0
    %321 = vmatpush1.msra.mxu0 0.0
    %322 = vmatprep.subr.mxu0 0.0
    %323 = vmatpush1.msra.mxu0 0.0
    %324 = vmatprep.subr.mxu0 0.0
    %325 = vmatpush1.msra.mxu0 0.0
    %326 = vmatprep.subr.mxu0 0.0
    %327 = vmatpush1.msra.mxu0 0.0
    %328 = vmatprep.subr.mxu0 0.0
    %329 = vmatpush1.msra.mxu0 0.0
    %330 = vmatprep.subr.mxu0 0.0
    %331 = vmatpush1.msra.mxu0 0.0
    %332 = vmatprep.subr.mxu0 0.0
    %333 = vmatpush1.msra.mxu0 0.0
    %334 = vmatprep.subr.mxu0 0.0
    %335 = vmatpush1.msra.mxu0 0.0
    %336 = vmatprep.subr.mxu0 0.0
    %337 = vmatpush1.msra.mxu0 0.0
    %338 = vmatprep.subr.mxu0 0.0
    %339 = vmatpush1.msra.mxu0 0.0
    %340 = vmatprep.subr.mxu0 0.0
    %341 = vmatpush1.msra.mxu0 0.0
    %342 = vmatprep.mubr.f32.mxu0 0.0
    %343 = vmatmul.mubr.f32.gmra.mrb[0].mxu0 %v276
    %v344 = vpop.f32.mrb[0].mxu0
    %v345 = vadd.f32 %v272, %v344
    %v346 = vpop.f32.mrb[0].mxu0
    %347 = vdwg.mxu0
    %v349 = vlaneseq
    %v350 = vshrl.u32 %v349, 7
    %v351 = vsub.s32 0, %v350
    %v352 = vrot.slane %v200, %v351
    %v354 = vadd.f32 %v345, %v352
    %v355 = vmax.f32 %v354, 0.0
    %v356 = vld [vmem:[%s7] sm:$0xff]
    %v357 = vld [vmem:[%s7 + $0x8] sm:$0xff]
    %v358 = vld [vmem:[%s7 + $0x10] sm:$0xff]
    %v359 = vld [vmem:[%s7 + $0x18] sm:$0xff]
    %v360 = vld [vmem:[#allocation12] sm:$0x1]
    %v362 = vlaneseq
    %v363 = vshrl.u32 %v362, 7
    %v364 = vsub.s32 0, %v363
    %v365 = vrot.slane %v360, %v364
    %v368 = vsel %vm201, %v355, 0
    %370 = vmatprep.subr.mxu0 0.0
    %371 = vmatpush1.msra.mxu0 %v356
    %372 = vmatprep.subr.mxu0 0.0
    %373 = vmatpush1.msra.mxu0 %v357
    %374 = vmatprep.subr.mxu0 0.0
    %375 = vmatpush1.msra.mxu0 %v358
    %376 = vmatprep.subr.mxu0 0.0
    %377 = vmatpush1.msra.mxu0 %v359
    %378 = vmatprep.subr.mxu0 0.0
    %379 = vmatpush1.msra.mxu0 0.0
    %380 = vmatprep.subr.mxu0 0.0
    %381 = vmatpush1.msra.mxu0 0.0
    %382 = vmatprep.subr.mxu0 0.0
    %383 = vmatpush1.msra.mxu0 0.0
    %384 = vmatprep.subr.mxu0 0.0
    %385 = vmatpush1.msra.mxu0 0.0
    %386 = vmatprep.subr.mxu0 0.0
    %387 = vmatpush1.msra.mxu0 0.0
    %388 = vmatprep.subr.mxu0 0.0
    %389 = vmatpush1.msra.mxu0 0.0
    %390 = vmatprep.subr.mxu0 0.0
    %391 = vmatpush1.msra.mxu0 0.0
    %392 = vmatprep.subr.mxu0 0.0
    %393 = vmatpush1.msra.mxu0 0.0
    %394 = vmatprep.subr.mxu0 0.0
    %395 = vmatpush1.msra.mxu0 0.0
    %396 = vmatprep.subr.mxu0 0.0
    %397 = vmatpush1.msra.mxu0 0.0
    %398 = vmatprep.subr.mxu0 0.0
    %399 = vmatpush1.msra.mxu0 0.0
    %400 = vmatprep.subr.mxu0 0.0
    %401 = vmatpush1.msra.mxu0 0.0
    %402 = vmatprep.subr.mxu0 0.0
    %403 = vmatpush1.msra.mxu0 0.0
    %404 = vmatprep.subr.mxu0 0.0
    %405 = vmatpush1.msra.mxu0 0.0
    %406 = vmatprep.subr.mxu0 0.0
    %407 = vmatpush1.msra.mxu0 0.0
    %408 = vmatprep.subr.mxu0 0.0
    %409 = vmatpush1.msra.mxu0 0.0
    %410 = vmatprep.subr.mxu0 0.0
    %411 = vmatpush1.msra.mxu0 0.0
    %412 = vmatprep.subr.mxu0 0.0
    %413 = vmatpush1.msra.mxu0 0.0
    %414 = vmatprep.subr.mxu0 0.0
    %415 = vmatpush1.msra.mxu0 0.0
    %416 = vmatprep.subr.mxu0 0.0
    %417 = vmatpush1.msra.mxu0 0.0
    %418 = vmatprep.subr.mxu0 0.0
    %419 = vmatpush1.msra.mxu0 0.0
    %420 = vmatprep.subr.mxu0 0.0
    %421 = vmatpush1.msra.mxu0 0.0
    %422 = vmatprep.subr.mxu0 0.0
    %423 = vmatpush1.msra.mxu0 0.0
    %424 = vmatprep.subr.mxu0 0.0
    %425 = vmatpush1.msra.mxu0 0.0
    %426 = vmatprep.subr.mxu0 0.0
    %427 = vmatpush1.msra.mxu0 0.0
    %428 = vmatprep.subr.mxu0 0.0
    %429 = vmatpush1.msra.mxu0 0.0
    %430 = vmatprep.subr.mxu0 0.0
    %431 = vmatpush1.msra.mxu0 0.0
    %432 = vmatprep.subr.mxu0 0.0
    %433 = vmatpush1.msra.mxu0 0.0
    %434 = vmatprep.mubr.f32.mxu0 0.0
    %435 = vmatmul.mubr.f32.gmra.mrb[0].mxu0 %v368
    %v436 = vpop.f32.mrb[0].mxu0
    %v437 = vadd.f32 %v365, %v436
    %v438 = vpop.f32.mrb[0].mxu0
    %439 = vdwg.mxu0
    %v440 = vmax.f32 %v437, 0.0
    %v441 = vld [vmem:[%s9] sm:$0xff]
    %v442 = vld [vmem:[%s9 + $0x8] sm:$0xff]
    %v443 = vld [vmem:[%s10] sm:$0x1]
    %v444 = vld [vmem:[%s11] sm:$0x1]
    %v445 = vld [vmem:[#allocation8] sm:$0x1]
    %v446 = vld [vmem:[%s13] sm:$0x1]
    %v448 = vlaneseq
    %v449 = vshrl.u32 %v448, 7
    %v450 = vsub.s32 0, %v449
    %v451 = vrot.slane %v443, %v450
    %vm453 = vcmask 130048
    %v455 = vsel %vm453, %v440, 0
    %457 = vmatprep.subr.mxu0 0.0
    %458 = vmatpush1.msra.mxu0 %v441
    %459 = vmatprep.subr.mxu0 0.0
    %460 = vmatpush1.msra.mxu0 %v442
    %461 = vmatprep.subr.mxu0 0.0
    %462 = vmatpush1.msra.mxu0 0.0
    %463 = vmatprep.subr.mxu0 0.0
    %464 = vmatpush1.msra.mxu0 0.0
    %465 = vmatprep.subr.mxu0 0.0
    %466 = vmatpush1.msra.mxu0 0.0
    %467 = vmatprep.subr.mxu0 0.0
    %468 = vmatpush1.msra.mxu0 0.0
    %469 = vmatprep.subr.mxu0 0.0
    %470 = vmatpush1.msra.mxu0 0.0
    %471 = vmatprep.subr.mxu0 0.0
    %472 = vmatpush1.msra.mxu0 0.0
    %473 = vmatprep.subr.mxu0 0.0
    %474 = vmatpush1.msra.mxu0 0.0
    %475 = vmatprep.subr.mxu0 0.0
    %476 = vmatpush1.msra.mxu0 0.0
    %477 = vmatprep.subr.mxu0 0.0
    %478 = vmatpush1.msra.mxu0 0.0
    %479 = vmatprep.subr.mxu0 0.0
    %480 = vmatpush1.msra.mxu0 0.0
    %481 = vmatprep.subr.mxu0 0.0
    %482 = vmatpush1.msra.mxu0 0.0
    %483 = vmatprep.subr.mxu0 0.0
    %484 = vmatpush1.msra.mxu0 0.0
    %485 = vmatprep.subr.mxu0 0.0
    %486 = vmatpush1.msra.mxu0 0.0
    %487 = vmatprep.subr.mxu0 0.0
    %488 = vmatpush1.msra.mxu0 0.0
    %489 = vmatprep.subr.mxu0 0.0
    %490 = vmatpush1.msra.mxu0 0.0
    %491 = vmatprep.subr.mxu0 0.0
    %492 = vmatpush1.msra.mxu0 0.0
    %493 = vmatprep.subr.mxu0 0.0
    %494 = vmatpush1.msra.mxu0 0.0
    %495 = vmatprep.subr.mxu0 0.0
    %496 = vmatpush1.msra.mxu0 0.0
    %497 = vmatprep.subr.mxu0 0.0
    %498 = vmatpush1.msra.mxu0 0.0
    %499 = vmatprep.subr.mxu0 0.0
    %500 = vmatpush1.msra.mxu0 0.0
    %501 = vmatprep.subr.mxu0 0.0
    %502 = vmatpush1.msra.mxu0 0.0
    %503 = vmatprep.subr.mxu0 0.0
    %504 = vmatpush1.msra.mxu0 0.0
    %505 = vmatprep.subr.mxu0 0.0
    %506 = vmatpush1.msra.mxu0 0.0
    %507 = vmatprep.subr.mxu0 0.0
    %508 = vmatpush1.msra.mxu0 0.0
    %509 = vmatprep.subr.mxu0 0.0
    %510 = vmatpush1.msra.mxu0 0.0
    %511 = vmatprep.subr.mxu0 0.0
    %512 = vmatpush1.msra.mxu0 0.0
    %513 = vmatprep.subr.mxu0 0.0
    %514 = vmatpush1.msra.mxu0 0.0
    %515 = vmatprep.subr.mxu0 0.0
    %516 = vmatpush1.msra.mxu0 0.0
    %517 = vmatprep.subr.mxu0 0.0
    %518 = vmatpush1.msra.mxu0 0.0
    %519 = vmatprep.subr.mxu0 0.0
    %520 = vmatpush1.msra.mxu0 0.0
    %521 = vmatprep.mubr.f32.mxu0 0.0
    %522 = vmatmul.mubr.f32.gmra.mrb[0].mxu0 %v455
    %v523 = vpop.f32.mrb[0].mxu0
    %v524 = vadd.f32 %v451, %v523
    %v525 = vpop.f32.mrb[0].mxu0
    %526 = vdwg.mxu0
    %v527 = vmax.f32 %v524, 0.0
    %v529 = vlaneseq
    %v530 = vshrl.u32 %v529, 7
    %v531 = vsub.s32 0, %v530
    %v532 = vrot.slane %v444, %v531
    %v534 = vmul.f32 %v527, %v532
    %535 = vadd.xlane.f32.xlu0 %v534
    %v536 = vpop.xlane.xlu0 %535
    %v538 = vlaneseq
    %v539 = vshrl.u32 %v538, 7
    %v540 = vsub.s32 0, %v539
    %v541 = vrot.slane %v445, %v540
    %v543 = vadd.f32 %v536, %v541
    %545 = vset.pattern.permute.xlu0 0
    %546 = vperm.xlu0 %545, %v543
    %v547 = vpop.permute.xlu0 %546
    %v550 = vlaneseq
    %v551 = vshrl.u32 %v550, 7
    %v552 = vsub.s32 0, %v551
    %v553 = vrot.slane %v446, %v552
    %v555 = vmul.f32 %v547, %v553
    %v556 = vadd.f32 %v524, %v555
    %557 = vst [vmem:[#allocation14] sm:$0xff] %v556
    // Predicated region
    $region124: #{tpu_custom_call.1} parent=1 // pred_check
      _
    $region125: #{tpu_custom_call.1} parent=1 // pred_check_branch
      %559 = sbr.rel (0) target = $region127
    $region126: #{tpu_custom_call.1} parent=1 // pred_region
      %s561 = ssub.s32 128, 128
      %562 = vsyncadd [#allocation11], %s561
      %s564 = sshll.u32 [#allocation14], 4
      %s565 = int_to_ptr.vmem [resolvable:$true] %s564
      %567 = dma.vmem_to_hbm [thread:$0]  %s565, 128, %s14, [#allocation11]
    $region127: #{tpu_custom_call.1} parent=1 // pred_fallthru
      _
    // Predicated region
    $region128: #{tpu_custom_call.1} parent=1 // pred_check
      _
    $region129: #{tpu_custom_call.1} parent=1 // pred_check_branch
      %569 = sbr.rel (0) target = $region131
    $region130: #{tpu_custom_call.1} parent=1 // pred_region
      %570 = dma.done [#allocation11], 128
    $region131: #{tpu_custom_call.1} parent=1 // pred_fallthru
      _
    %571 = vsyncpa [#allocation10], 1
    %572 = vsyncpa [#allocation13], 1
    %573 = vsyncpa [#allocation11], 1
  %574 = vsyncmov [#allocation4]
  %s575 = vpop.sfrf %574
  %p576 = scmp.eq.s32.totalorder %s575, 0
  %p577 = pneg %p576
  %579 = shalt.err (%p577)
  %s580 = scalar_lea.sflag [#allocation4], 1
  %581 = vsyncmov %s580
  %s582 = vpop.sfrf %581
  %p583 = scmp.eq.s32.totalorder %s582, 0
  %p584 = pneg %p583
  %586 = shalt.err (%p584)

// kernel: tpu_custom_call.1
$region0: #{tpu_custom_call.1}
  #allocation0 [shape = 'u32[]', space=smem, size = 0x4, offset = 0x4, fixed_abs, tag = 'smem constant byte address 0x4 - core index']
  #allocation1 [shape = 'u32[144,128]{1,0:T(1,128)}', space=vmem, size = 0x12000, scoped, tag = 'internal scratch']
  #allocation2 [shape = 'f32[8,32]{1,0:T(8,128)}', space=vmem, size = 0x1000, scoped, tag = 'scratch operand']
  #allocation3 [shape = 'f32[8,32]{1,0:T(8,128)}', space=vmem, size = 0x1000, scoped, tag = 'scratch operand']
  #allocation4 [shape = 's32[2]{0}', space=sflag, size = 0x8, scoped, tag = 'scratch operand']
  #allocation5 [shape = 's32[1]{0}', space=sflag, size = 0x4, scoped, tag = 'scoped memory for tpu_custom_call.1']
  #allocation6 [shape = 'u8[512]{0}', space=smem, size = 0x200, scoped, tag = 'prefetched SMEM operand 0']
  #allocation7 [shape = 'u8[512]{0}', space=smem, size = 0x200, scoped, tag = 'prefetched SMEM operand 1']
  #allocation8 [shape = 'f32[1,1]{1,0:T(1,128)S(1)}', space=vmem, size = 0x200, scoped, tag = 'scoped memory for tpu_custom_call.1']
  #allocation15 [shape = 's32[]', space=sflag, size = 0x4, offset = 0, fixed_abs, tag = 'sflag constant byte address 0x0 - dummy sync flag']
  #allocation16 [shape = 's32[]', space=sflag, size = 0x4, offset = 0, fixed_abs, tag = 'sflag constant byte address 0x0 - dummy sync flag']
  %s0 = inlined_call_operand.vmem [shape: s32[8], index: 0, kind: input, shape index: {}]
  %s1 = inlined_call_operand.vmem [shape: s32[8], index: 1, kind: input, shape index: {}]
  %s2 = inlined_call_operand.vmem [shape: f32[32,32], index: 2, kind: input, shape index: {}]
  %s3 = inlined_call_operand.vmem [shape: f32[48,32], index: 3, kind: input, shape index: {}]
  %s4 = inlined_call_operand.vmem [shape: f32[32,32], index: 4, kind: input, shape index: {}]
  %s5 = inlined_call_operand.vmem [shape: f32[32,32], index: 5, kind: input, shape index: {}]
  %s6 = inlined_call_operand.hbm [shape: f32[1,32], index: 6, kind: input, shape index: {}]
  %s7 = inlined_call_operand.vmem [shape: f32[32,16], index: 7, kind: input, shape index: {}]
  %s8 = inlined_call_operand.hbm [shape: f32[1,16], index: 8, kind: input, shape index: {}]
  %s9 = inlined_call_operand.vmem [shape: f32[16,128], index: 9, kind: input, shape index: {}]
  %s10 = inlined_call_operand.vmem [shape: f32[1,128], index: 10, kind: input, shape index: {}]
  %s11 = inlined_call_operand.vmem [shape: f32[1,128], index: 11, kind: input, shape index: {}]
  %s12 = inlined_call_operand.<no memory space> [shape: f32[1,1], index: 12, kind: input, shape index: {}]
  %s13 = inlined_call_operand.vmem [shape: f32[1,128], index: 13, kind: input, shape index: {}]
  %s14 = inlined_call_operand.hbm [shape: f32[8,128], index: 14, kind: output, shape index: {}]
  %s15 = sld [smem:[#allocation0]]
  $region132: #{tpu_custom_call.1} parent=0
    _
  %s17 = ssub.s32 1, %s15
  %s18 = scalar_select 0, %s17, %s15
  %s19 = sshll.u32 %s0, 4
  %s20 = int_to_ptr.vmem [resolvable:$true] %s19
  %22 = dma.vmem_to_smem %s20, 16, [#allocation6], [#allocation5]
  %s23 = sshll.u32 %s1, 4
  %s24 = int_to_ptr.vmem [resolvable:$true] %s23
  %26 = dma.vmem_to_smem %s24, 16, [#allocation7], [#allocation5]
  %v27 = vstv %s12
  %28 = vst [vmem:[#allocation8] sm:$0x1] %v27
  %29 = dma.done [#allocation5], 32
  %30 = sfence
  $region1: #{tpu_custom_call.1} parent=0
    #allocation9 [shape = 'u8[512]{0}', space=vmem, size = 0x400, scoped, tag = 'input window, operand 6, single buffered']
    #allocation10 [shape = 's32[1]{0}', space=sflag, size = 0x4, scoped, tag = 'scoped memory for tpu_custom_call.1']
    #allocation11 [shape = 's32[1]{0}', space=sflag, size = 0x4, scoped, tag = 'scoped memory for tpu_custom_call.1']
    #allocation12 [shape = 'u8[512]{0}', space=vmem, size = 0x400, scoped, tag = 'input window, operand 8, single buffered']
    #allocation13 [shape = 's32[1]{0}', space=sflag, size = 0x4, scoped, tag = 'scoped memory for tpu_custom_call.1']
    #allocation14 [shape = 'u8[4096]{0}', space=vmem, size = 0x1000, scoped, tag = 'output window, operand 0, single buffered']
    %31 = vsyncpa [#allocation10], 0
    %32 = vsyncpa [#allocation13], 0
    %33 = vsyncpa [#allocation11], 0
    // Predicated region
    $region2: #{tpu_custom_call.1} parent=1 // pred_check
      _
    $region3: #{tpu_custom_call.1} parent=1 // pred_check_branch
      %35 = sbr.rel (0) target = $region5
    $region4: #{tpu_custom_call.1} parent=1 // pred_region
      _
    $region5: #{tpu_custom_call.1} parent=1 // pred_fallthru
      _
    // Predicated region
    $region6: #{tpu_custom_call.1} parent=1 // pred_check
      _
    $region7: #{tpu_custom_call.1} parent=1 // pred_check_branch
      %37 = sbr.rel (0) target = $region9
    $region8: #{tpu_custom_call.1} parent=1 // pred_region
      _
    $region9: #{tpu_custom_call.1} parent=1 // pred_fallthru
      _
    // Predicated region
    $region10: #{tpu_custom_call.1} parent=1 // pred_check
      _
    $region11: #{tpu_custom_call.1} parent=1 // pred_check_branch
      %39 = sbr.rel (0) target = $region13
    $region12: #{tpu_custom_call.1} parent=1 // pred_region
      %s41 = ssub.s32 16, 16
      %42 = vsyncadd [#allocation10], %s41
      %s44 = sshll.u32 [#allocation9], 4
      %s45 = int_to_ptr.vmem [resolvable:$true] %s44
      %47 = dma.hbm_to_vmem [thread:$0]  %s6, 16, %s45, [#allocation10]
    $region13: #{tpu_custom_call.1} parent=1 // pred_fallthru
      _
    // Predicated region
    $region14: #{tpu_custom_call.1} parent=1 // pred_check
      _
    $region15: #{tpu_custom_call.1} parent=1 // pred_check_branch
      %49 = sbr.rel (0) target = $region17
    $region16: #{tpu_custom_call.1} parent=1 // pred_region
      _
    $region17: #{tpu_custom_call.1} parent=1 // pred_fallthru
      _
    // Predicated region
    $region18: #{tpu_custom_call.1} parent=1 // pred_check
      _
    $region19: #{tpu_custom_call.1} parent=1 // pred_check_branch
      %51 = sbr.rel (0) target = $region21
    $region20: #{tpu_custom_call.1} parent=1 // pred_region
      %s53 = ssub.s32 16, 16
      %54 = vsyncadd [#allocation13], %s53
      %s56 = sshll.u32 [#allocation12], 4
      %s57 = int_to_ptr.vmem [resolvable:$true] %s56
      %59 = dma.hbm_to_vmem [thread:$0]  %s8, 16, %s57, [#allocation13]
    $region21: #{tpu_custom_call.1} parent=1 // pred_fallthru
      _
    // Predicated region
    $region22: #{tpu_custom_call.1} parent=1 // pred_check
      _
    $region23: #{tpu_custom_call.1} parent=1 // pred_check_branch
      %61 = sbr.rel (0) target = $region25
    $region24: #{tpu_custom_call.1} parent=1 // pred_region
      _
    $region25: #{tpu_custom_call.1} parent=1 // pred_fallthru
      _
    // Predicated region
    $region26: #{tpu_custom_call.1} parent=1 // pred_check
      _
    $region27: #{tpu_custom_call.1} parent=1 // pred_check_branch
      %63 = sbr.rel (0) target = $region29
    $region28: #{tpu_custom_call.1} parent=1 // pred_region
      _
    $region29: #{tpu_custom_call.1} parent=1 // pred_fallthru
      _
    // Predicated region
    $region30: #{tpu_custom_call.1} parent=1 // pred_check
      _
    $region31: #{tpu_custom_call.1} parent=1 // pred_check_branch
      %65 = sbr.rel (0) target = $region33
    $region32: #{tpu_custom_call.1} parent=1 // pred_region
      _
    $region33: #{tpu_custom_call.1} parent=1 // pred_fallthru
      _
    // Predicated region
    $region34: #{tpu_custom_call.1} parent=1 // pred_check
      _
    $region35: #{tpu_custom_call.1} parent=1 // pred_check_branch
      %67 = sbr.rel (0) target = $region37
    $region36: #{tpu_custom_call.1} parent=1 // pred_region
      _
    $region37: #{tpu_custom_call.1} parent=1 // pred_fallthru
      _
    // Predicated region
    $region38: #{tpu_custom_call.1} parent=1 // pred_check
      _
    $region39: #{tpu_custom_call.1} parent=1 // pred_check_branch
      %69 = sbr.rel (0) target = $region41
    $region40: #{tpu_custom_call.1} parent=1 // pred_region
      _
    $region41: #{tpu_custom_call.1} parent=1 // pred_fallthru
      _
    // Predicated region
    $region42: #{tpu_custom_call.1} parent=1 // pred_check
      _
    $region43: #{tpu_custom_call.1} parent=1 // pred_check_branch
      %71 = sbr.rel (0) target = $region45
    $region44: #{tpu_custom_call.1} parent=1 // pred_region
      %72 = dma.done [#allocation10], 16
    $region45: #{tpu_custom_call.1} parent=1 // pred_fallthru
      _
    // Predicated region
    $region46: #{tpu_custom_call.1} parent=1 // pred_check
      _
    $region47: #{tpu_custom_call.1} parent=1 // pred_check_branch
      %74 = sbr.rel (0) target = $region49
    $region48: #{tpu_custom_call.1} parent=1 // pred_region
      %75 = dma.done [#allocation13], 16
    $region49: #{tpu_custom_call.1} parent=1 // pred_fallthru
      _
    %s76 = smul.u32 0, 8
    loop: start=0, step=1, limit=8
    $region50: #{tpu_custom_call.1} parent=1 // loop_pre_header
      _
    $region51: #{tpu_custom_call.1} parent=1 // loop_header
      %s78 = sphi 0, %s82
      %p79 = scmp.ge.s32.totalorder %s78, 8
    $region52: #{tpu_custom_call.1} parent=1 // loop_header_branch
      %81 = sbr.rel (%p79) target = $region56
    $region53: #{tpu_custom_call.1} parent=1 // loop_body
      %s83 = sadd.s32 %s76, %s78
      %s84 = sld [smem:[#allocation6 + %s83]]
      %s85 = scalar_lea.vmem %s2, %s84
      %s86 = scalar_lea.vmem [#allocation2], %s78
      %p88 = scmp.lt.u32.totalorder 1, 8
      %p89 = pneg %p88
      // Predicated region
      $region57: #{tpu_custom_call.1} parent=53 // pred_check
        _
      $region58: #{tpu_custom_call.1} parent=53 // pred_check_branch
        %91 = sbr.rel (%p88) target = $region60
      $region59: #{tpu_custom_call.1} parent=53 // pred_region
        %s106 = sand.u32 1, 7
        %p107 = scmp.eq.s32.totalorder %s106, 0
        %p108 = pneg %p107
        // Predicated region
        $region72: #{tpu_custom_call.1} parent=59 // pred_check
          _
        $region73: #{tpu_custom_call.1} parent=59 // pred_check_branch
          %110 = sbr.rel (%p107) target = $region75
        $region74: #{tpu_custom_call.1} parent=59 // pred_region
          %s111 = sand.u32 1, 7
          %s112 = ssub.s32 1, %s111
          %s113 = scalar_lea.vmem %s85, %s112
          %s114 = ssub.s32 1, %s111
          %s115 = scalar_lea.vmem %s86, %s114 [#allocation2]
          %s116 = sshllo.u32 0, %s111
          loop: start=0, step=1, limit=1
          $region76: #{tpu_custom_call.1} parent=74 // loop_pre_header
            _
          $region77: #{tpu_custom_call.1} parent=74 // loop_header
            %s118 = sphi 0, %s122
            %p119 = scmp.ge.s32.totalorder %s118, 1
            %s123 = sphi %s113, %s113
            %s124 = sphi %s115, %s115
          $region78: #{tpu_custom_call.1} parent=74 // loop_header_branch
            %121 = sbr.rel (%p119) target = $region82
          $region79: #{tpu_custom_call.1} parent=74 // loop_body
            %v125 = vld [vmem:[%s123] sm:%s116]
            %126 = vst [vmem:[%s124] sm:%s116] %v125
          $region80: #{tpu_custom_call.1} parent=74 // loop_footer
            %s122 = sadd.s32 1, %s118
          $region81: #{tpu_custom_call.1} parent=74 // loop_footer_branch
            %117 = sbr.rel target = $region77
          $region82: #{tpu_custom_call.1} parent=74 // loop_exit
            _
        $region75: #{tpu_custom_call.1} parent=59 // pred_fallthru
          _
      $region60: #{tpu_custom_call.1} parent=53 // pred_fallthru
        _
      // Predicated region
      $region61: #{tpu_custom_call.1} parent=53 // pred_check
        %p92 = pneg %p88
      $region62: #{tpu_custom_call.1} parent=53 // pred_check_branch
        %94 = sbr.rel (%p92) target = $region64
      $region63: #{tpu_custom_call.1} parent=53 // pred_region
        %s95 = sshllo.u32 0, 1
        loop: start=0, step=1, limit=1
        $region65: #{tpu_custom_call.1} parent=63 // loop_pre_header
          _
        $region66: #{tpu_custom_call.1} parent=63 // loop_header
          %s97 = sphi 0, %s101
          %p98 = scmp.ge.s32.totalorder %s97, 1
          %s102 = sphi %s85, %s85
          %s103 = sphi %s86, %s86
        $region67: #{tpu_custom_call.1} parent=63 // loop_header_branch
          %100 = sbr.rel (%p98) target = $region71
        $region68: #{tpu_custom_call.1} parent=63 // loop_body
          %v104 = vld [vmem:[%s102] sm:%s95]
          %105 = vst [vmem:[%s103] sm:%s95] %v104
        $region69: #{tpu_custom_call.1} parent=63 // loop_footer
          %s101 = sadd.s32 1, %s97
        $region70: #{tpu_custom_call.1} parent=63 // loop_footer_branch
          %96 = sbr.rel target = $region66
        $region71: #{tpu_custom_call.1} parent=63 // loop_exit
          _
      $region64: #{tpu_custom_call.1} parent=53 // pred_fallthru
        _
      // Predicated region
      $region83: #{tpu_custom_call.1} parent=53 // pred_check
        _
      $region84: #{tpu_custom_call.1} parent=53 // pred_check_branch
        %129 = sbr.rel (0) target = $region86
      $region85: #{tpu_custom_call.1} parent=53 // pred_region
        %130 = vsyncadd [#allocation4], 16
      $region86: #{tpu_custom_call.1} parent=53 // pred_fallthru
        _
      %s131 = sld [smem:[#allocation7 + %s83]]
      %s132 = scalar_lea.vmem %s3, %s131
      %s133 = scalar_lea.vmem [#allocation3], %s78
      %s134 = scalar_lea.sflag [#allocation4], 1
      %p136 = scmp.lt.u32.totalorder 1, 8
      %p137 = pneg %p136
      // Predicated region
      $region87: #{tpu_custom_call.1} parent=53 // pred_check
        _
      $region88: #{tpu_custom_call.1} parent=53 // pred_check_branch
        %139 = sbr.rel (%p136) target = $region90
      $region89: #{tpu_custom_call.1} parent=53 // pred_region
        %s154 = sand.u32 1, 7
        %p155 = scmp.eq.s32.totalorder %s154, 0
        %p156 = pneg %p155
        // Predicated region
        $region102: #{tpu_custom_call.1} parent=89 // pred_check
          _
        $region103: #{tpu_custom_call.1} parent=89 // pred_check_branch
          %158 = sbr.rel (%p155) target = $region105
        $region104: #{tpu_custom_call.1} parent=89 // pred_region
          %s159 = sand.u32 1, 7
          %s160 = ssub.s32 1, %s159
          %s161 = scalar_lea.vmem %s132, %s160
          %s162 = ssub.s32 1, %s159
          %s163 = scalar_lea.vmem %s133, %s162 [#allocation3]
          %s164 = sshllo.u32 0, %s159
          loop: start=0, step=1, limit=1
          $region106: #{tpu_custom_call.1} parent=104 // loop_pre_header
            _
          $region107: #{tpu_custom_call.1} parent=104 // loop_header
            %s166 = sphi 0, %s170
            %p167 = scmp.ge.s32.totalorder %s166, 1
            %s171 = sphi %s161, %s161
            %s172 = sphi %s163, %s163
          $region108: #{tpu_custom_call.1} parent=104 // loop_header_branch
            %169 = sbr.rel (%p167) target = $region112
          $region109: #{tpu_custom_call.1} parent=104 // loop_body
            %v173 = vld [vmem:[%s171] sm:%s164]
            %174 = vst [vmem:[%s172] sm:%s164] %v173
          $region110: #{tpu_custom_call.1} parent=104 // loop_footer
            %s170 = sadd.s32 1, %s166
          $region111: #{tpu_custom_call.1} parent=104 // loop_footer_branch
            %165 = sbr.rel target = $region107
          $region112: #{tpu_custom_call.1} parent=104 // loop_exit
            _
        $region105: #{tpu_custom_call.1} parent=89 // pred_fallthru
          _
      $region90: #{tpu_custom_call.1} parent=53 // pred_fallthru
        _
      // Predicated region
      $region91: #{tpu_custom_call.1} parent=53 // pred_check
        %p140 = pneg %p136
      $region92: #{tpu_custom_call.1} parent=53 // pred_check_branch
        %142 = sbr.rel (%p140) target = $region94
      $region93: #{tpu_custom_call.1} parent=53 // pred_region
        %s143 = sshllo.u32 0, 1
        loop: start=0, step=1, limit=1
        $region95: #{tpu_custom_call.1} parent=93 // loop_pre_header
          _
        $region96: #{tpu_custom_call.1} parent=93 // loop_header
          %s145 = sphi 0, %s149
          %p146 = scmp.ge.s32.totalorder %s145, 1
          %s150 = sphi %s132, %s132
          %s151 = sphi %s133, %s133
        $region97: #{tpu_custom_call.1} parent=93 // loop_header_branch
          %148 = sbr.rel (%p146) target = $region101
        $region98: #{tpu_custom_call.1} parent=93 // loop_body
          %v152 = vld [vmem:[%s150] sm:%s143]
          %153 = vst [vmem:[%s151] sm:%s143] %v152
        $region99: #{tpu_custom_call.1} parent=93 // loop_footer
          %s149 = sadd.s32 1, %s145
        $region100: #{tpu_custom_call.1} parent=93 // loop_footer_branch
          %144 = sbr.rel target = $region96
        $region101: #{tpu_custom_call.1} parent=93 // loop_exit
          _
      $region94: #{tpu_custom_call.1} parent=53 // pred_fallthru
        _
      // Predicated region
      $region113: #{tpu_custom_call.1} parent=53 // pred_check
        _
      $region114: #{tpu_custom_call.1} parent=53 // pred_check_branch
        %177 = sbr.rel (0) target = $region116
      $region115: #{tpu_custom_call.1} parent=53 // pred_region
        %178 = vsyncadd %s134, 16
      $region116: #{tpu_custom_call.1} parent=53 // pred_fallthru
        _
    $region54: #{tpu_custom_call.1} parent=1 // loop_footer
      %s82 = sadd.s32 1, %s78
    $region55: #{tpu_custom_call.1} parent=1 // loop_footer_branch
      %77 = sbr.rel target = $region51
    $region56: #{tpu_custom_call.1} parent=1 // loop_exit
      _
    loop: start=0, step=1, limit=8
    $region117: #{tpu_custom_call.1} parent=1 // loop_pre_header
      _
    $region118: #{tpu_custom_call.1} parent=1 // loop_header
      %s180 = sphi 0, %s184
      %p181 = scmp.ge.s32.totalorder %s180, 8
    $region119: #{tpu_custom_call.1} parent=1 // loop_header_branch
      %183 = sbr.rel (%p181) target = $region123
    $region120: #{tpu_custom_call.1} parent=1 // loop_body
      %186 = dma.done [#allocation4], 16
      %s187 = scalar_lea.sflag [#allocation4], 1
      %189 = dma.done %s187, 16
    $region121: #{tpu_custom_call.1} parent=1 // loop_footer
      %s184 = sadd.s32 1, %s180
    $region122: #{tpu_custom_call.1} parent=1 // loop_footer_branch
      %179 = sbr.rel target = $region118
    $region123: #{tpu_custom_call.1} parent=1 // loop_exit
      _
    %v190 = vld [vmem:[#allocation2] sm:$0xff]
    %v191 = vld [vmem:[#allocation3] sm:$0xff]
    %v192 = vld [vmem:[%s4] sm:$0xff]
    %v193 = vld [vmem:[%s4 + $0x8] sm:$0xff]
    %v194 = vld [vmem:[%s4 + $0x10] sm:$0xff]
    %v195 = vld [vmem:[%s4 + $0x18] sm:$0xff]
    %v196 = vld [vmem:[%s5] sm:$0xff]
    %v197 = vld [vmem:[%s5 + $0x8] sm:$0xff]
    %v198 = vld [vmem:[%s5 + $0x10] sm:$0xff]
    %v199 = vld [vmem:[%s5 + $0x18] sm:$0xff]
    %v200 = vld [vmem:[#allocation9] sm:$0x1]
    %vm201 = vcmask 261120
    %v203 = vsel %vm201, %v191, 0
    %205 = vmatprep.subr.mxu0 0.0
    %206 = vmatpush1.msra.mxu0 %v196
    %207 = vmatprep.subr.mxu0 0.0
    %208 = vmatpush1.msra.mxu0 %v197
    %209 = vmatprep.subr.mxu0 0.0
    %210 = vmatpush1.msra.mxu0 %v198
    %211 = vmatprep.subr.mxu0 0.0
    %212 = vmatpush1.msra.mxu0 %v199
    %213 = vmatprep.subr.mxu0 0.0
    %214 = vmatpush1.msra.mxu0 0.0
    %215 = vmatprep.subr.mxu0 0.0
    %216 = vmatpush1.msra.mxu0 0.0
    %217 = vmatprep.subr.mxu0 0.0
    %218 = vmatpush1.msra.mxu0 0.0
    %219 = vmatprep.subr.mxu0 0.0
    %220 = vmatpush1.msra.mxu0 0.0
    %221 = vmatprep.subr.mxu0 0.0
    %222 = vmatpush1.msra.mxu0 0.0
    %223 = vmatprep.subr.mxu0 0.0
    %224 = vmatpush1.msra.mxu0 0.0
    %225 = vmatprep.subr.mxu0 0.0
    %226 = vmatpush1.msra.mxu0 0.0
    %227 = vmatprep.subr.mxu0 0.0
    %228 = vmatpush1.msra.mxu0 0.0
    %229 = vmatprep.subr.mxu0 0.0
    %230 = vmatpush1.msra.mxu0 0.0
    %231 = vmatprep.subr.mxu0 0.0
    %232 = vmatpush1.msra.mxu0 0.0
    %233 = vmatprep.subr.mxu0 0.0
    %234 = vmatpush1.msra.mxu0 0.0
    %235 = vmatprep.subr.mxu0 0.0
    %236 = vmatpush1.msra.mxu0 0.0
    %237 = vmatprep.subr.mxu0 0.0
    %238 = vmatpush1.msra.mxu0 0.0
    %239 = vmatprep.subr.mxu0 0.0
    %240 = vmatpush1.msra.mxu0 0.0
    %241 = vmatprep.subr.mxu0 0.0
    %242 = vmatpush1.msra.mxu0 0.0
    %243 = vmatprep.subr.mxu0 0.0
    %244 = vmatpush1.msra.mxu0 0.0
    %245 = vmatprep.subr.mxu0 0.0
    %246 = vmatpush1.msra.mxu0 0.0
    %247 = vmatprep.subr.mxu0 0.0
    %248 = vmatpush1.msra.mxu0 0.0
    %249 = vmatprep.subr.mxu0 0.0
    %250 = vmatpush1.msra.mxu0 0.0
    %251 = vmatprep.subr.mxu0 0.0
    %252 = vmatpush1.msra.mxu0 0.0
    %253 = vmatprep.subr.mxu0 0.0
    %254 = vmatpush1.msra.mxu0 0.0
    %255 = vmatprep.subr.mxu0 0.0
    %256 = vmatpush1.msra.mxu0 0.0
    %257 = vmatprep.subr.mxu0 0.0
    %258 = vmatpush1.msra.mxu0 0.0
    %259 = vmatprep.subr.mxu0 0.0
    %260 = vmatpush1.msra.mxu0 0.0
    %261 = vmatprep.subr.mxu0 0.0
    %262 = vmatpush1.msra.mxu0 0.0
    %263 = vmatprep.subr.mxu0 0.0
    %264 = vmatpush1.msra.mxu0 0.0
    %265 = vmatprep.subr.mxu0 0.0
    %266 = vmatpush1.msra.mxu0 0.0
    %267 = vmatprep.subr.mxu0 0.0
    %268 = vmatpush1.msra.mxu0 0.0
    %269 = vmatprep.mubr.f32.mxu0 0.0
    %270 = vmatmul.mubr.f32.gmra.mrb[0].mxu0 %v203
    %v271 = vpop.f32.mrb[0].mxu0
    %v272 = vadd.f32 0.0, %v271
    %v273 = vpop.f32.mrb[0].mxu0
    %274 = vdwg.mxu0
    %v276 = vsel %vm201, %v190, 0
    %278 = vmatprep.subr.mxu0 0.0
    %279 = vmatpush1.msra.mxu0 %v192
    %280 = vmatprep.subr.mxu0 0.0
    %281 = vmatpush1.msra.mxu0 %v193
    %282 = vmatprep.subr.mxu0 0.0
    %283 = vmatpush1.msra.mxu0 %v194
    %284 = vmatprep.subr.mxu0 0.0
    %285 = vmatpush1.msra.mxu0 %v195
    %286 = vmatprep.subr.mxu0 0.0
    %287 = vmatpush1.msra.mxu0 0.0
    %288 = vmatprep.subr.mxu0 0.0
    %289 = vmatpush1.msra.mxu0 0.0
    %290 = vmatprep.subr.mxu0 0.0
    %291 = vmatpush1.msra.mxu0 0.0
    %292 = vmatprep.subr.mxu0 0.0
    %293 = vmatpush1.msra.mxu0 0.0
    %294 = vmatprep.subr.mxu0 0.0
    %295 = vmatpush1.msra.mxu0 0.0
    %296 = vmatprep.subr.mxu0 0.0
    %297 = vmatpush1.msra.mxu0 0.0
    %298 = vmatprep.subr.mxu0 0.0
    %299 = vmatpush1.msra.mxu0 0.0
    %300 = vmatprep.subr.mxu0 0.0
    %301 = vmatpush1.msra.mxu0 0.0
    %302 = vmatprep.subr.mxu0 0.0
    %303 = vmatpush1.msra.mxu0 0.0
    %304 = vmatprep.subr.mxu0 0.0
    %305 = vmatpush1.msra.mxu0 0.0
    %306 = vmatprep.subr.mxu0 0.0
    %307 = vmatpush1.msra.mxu0 0.0
    %308 = vmatprep.subr.mxu0 0.0
    %309 = vmatpush1.msra.mxu0 0.0
    %310 = vmatprep.subr.mxu0 0.0
    %311 = vmatpush1.msra.mxu0 0.0
    %312 = vmatprep.subr.mxu0 0.0
    %313 = vmatpush1.msra.mxu0 0.0
    %314 = vmatprep.subr.mxu0 0.0
    %315 = vmatpush1.msra.mxu0 0.0
    %316 = vmatprep.subr.mxu0 0.0
    %317 = vmatpush1.msra.mxu0 0.0
    %318 = vmatprep.subr.mxu0 0.0
    %319 = vmatpush1.msra.mxu0 0.0
    %320 = vmatprep.subr.mxu0 0.0
    %321 = vmatpush1.msra.mxu0 0.0
    %322 = vmatprep.subr.mxu0 0.0
    %323 = vmatpush1.msra.mxu0 0.0
    %324 = vmatprep.subr.mxu0 0.0
    %325 = vmatpush1.msra.mxu0 0.0
    %326 = vmatprep.subr.mxu0 0.0
    %327 = vmatpush1.msra.mxu0 0.0
    %328 = vmatprep.subr.mxu0 0.0
    %329 = vmatpush1.msra.mxu0 0.0
    %330 = vmatprep.subr.mxu0 0.0
    %331 = vmatpush1.msra.mxu0 0.0
    %332 = vmatprep.subr.mxu0 0.0
    %333 = vmatpush1.msra.mxu0 0.0
    %334 = vmatprep.subr.mxu0 0.0
    %335 = vmatpush1.msra.mxu0 0.0
    %336 = vmatprep.subr.mxu0 0.0
    %337 = vmatpush1.msra.mxu0 0.0
    %338 = vmatprep.subr.mxu0 0.0
    %339 = vmatpush1.msra.mxu0 0.0
    %340 = vmatprep.subr.mxu0 0.0
    %341 = vmatpush1.msra.mxu0 0.0
    %342 = vmatprep.mubr.f32.mxu0 0.0
    %343 = vmatmul.mubr.f32.gmra.mrb[0].mxu0 %v276
    %v344 = vpop.f32.mrb[0].mxu0
    %v345 = vadd.f32 %v272, %v344
    %v346 = vpop.f32.mrb[0].mxu0
    %347 = vdwg.mxu0
    %v349 = vlaneseq
    %v350 = vshrl.u32 %v349, 7
    %v351 = vsub.s32 0, %v350
    %v352 = vrot.slane %v200, %v351
    %v354 = vadd.f32 %v345, %v352
    %v355 = vmax.f32 %v354, 0.0
    %v356 = vld [vmem:[%s7] sm:$0xff]
    %v357 = vld [vmem:[%s7 + $0x8] sm:$0xff]
    %v358 = vld [vmem:[%s7 + $0x10] sm:$0xff]
    %v359 = vld [vmem:[%s7 + $0x18] sm:$0xff]
    %v360 = vld [vmem:[#allocation12] sm:$0x1]
    %v362 = vlaneseq
    %v363 = vshrl.u32 %v362, 7
    %v364 = vsub.s32 0, %v363
    %v365 = vrot.slane %v360, %v364
    %v368 = vsel %vm201, %v355, 0
    %370 = vmatprep.subr.mxu0 0.0
    %371 = vmatpush1.msra.mxu0 %v356
    %372 = vmatprep.subr.mxu0 0.0
    %373 = vmatpush1.msra.mxu0 %v357
    %374 = vmatprep.subr.mxu0 0.0
    %375 = vmatpush1.msra.mxu0 %v358
    %376 = vmatprep.subr.mxu0 0.0
    %377 = vmatpush1.msra.mxu0 %v359
    %378 = vmatprep.subr.mxu0 0.0
    %379 = vmatpush1.msra.mxu0 0.0
    %380 = vmatprep.subr.mxu0 0.0
    %381 = vmatpush1.msra.mxu0 0.0
    %382 = vmatprep.subr.mxu0 0.0
    %383 = vmatpush1.msra.mxu0 0.0
    %384 = vmatprep.subr.mxu0 0.0
    %385 = vmatpush1.msra.mxu0 0.0
    %386 = vmatprep.subr.mxu0 0.0
    %387 = vmatpush1.msra.mxu0 0.0
    %388 = vmatprep.subr.mxu0 0.0
    %389 = vmatpush1.msra.mxu0 0.0
    %390 = vmatprep.subr.mxu0 0.0
    %391 = vmatpush1.msra.mxu0 0.0
    %392 = vmatprep.subr.mxu0 0.0
    %393 = vmatpush1.msra.mxu0 0.0
    %394 = vmatprep.subr.mxu0 0.0
    %395 = vmatpush1.msra.mxu0 0.0
    %396 = vmatprep.subr.mxu0 0.0
    %397 = vmatpush1.msra.mxu0 0.0
    %398 = vmatprep.subr.mxu0 0.0
    %399 = vmatpush1.msra.mxu0 0.0
    %400 = vmatprep.subr.mxu0 0.0
    %401 = vmatpush1.msra.mxu0 0.0
    %402 = vmatprep.subr.mxu0 0.0
    %403 = vmatpush1.msra.mxu0 0.0
    %404 = vmatprep.subr.mxu0 0.0
    %405 = vmatpush1.msra.mxu0 0.0
    %406 = vmatprep.subr.mxu0 0.0
    %407 = vmatpush1.msra.mxu0 0.0
    %408 = vmatprep.subr.mxu0 0.0
    %409 = vmatpush1.msra.mxu0 0.0
    %410 = vmatprep.subr.mxu0 0.0
    %411 = vmatpush1.msra.mxu0 0.0
    %412 = vmatprep.subr.mxu0 0.0
    %413 = vmatpush1.msra.mxu0 0.0
    %414 = vmatprep.subr.mxu0 0.0
    %415 = vmatpush1.msra.mxu0 0.0
    %416 = vmatprep.subr.mxu0 0.0
    %417 = vmatpush1.msra.mxu0 0.0
    %418 = vmatprep.subr.mxu0 0.0
    %419 = vmatpush1.msra.mxu0 0.0
    %420 = vmatprep.subr.mxu0 0.0
    %421 = vmatpush1.msra.mxu0 0.0
    %422 = vmatprep.subr.mxu0 0.0
    %423 = vmatpush1.msra.mxu0 0.0
    %424 = vmatprep.subr.mxu0 0.0
    %425 = vmatpush1.msra.mxu0 0.0
    %426 = vmatprep.subr.mxu0 0.0
    %427 = vmatpush1.msra.mxu0 0.0
    %428 = vmatprep.subr.mxu0 0.0
    %429 = vmatpush1.msra.mxu0 0.0
    %430 = vmatprep.subr.mxu0 0.0
    %431 = vmatpush1.msra.mxu0 0.0
    %432 = vmatprep.subr.mxu0 0.0
    %433 = vmatpush1.msra.mxu0 0.0
    %434 = vmatprep.mubr.f32.mxu0 0.0
    %435 = vmatmul.mubr.f32.gmra.mrb[0].mxu0 %v368
    %v436 = vpop.f32.mrb[0].mxu0
    %v437 = vadd.f32 %v365, %v436
    %v438 = vpop.f32.mrb[0].mxu0
    %439 = vdwg.mxu0
    %v440 = vmax.f32 %v437, 0.0
    %v441 = vld [vmem:[%s9] sm:$0xff]
    %v442 = vld [vmem:[%s9 + $0x8] sm:$0xff]
    %v443 = vld [vmem:[%s10] sm:$0x1]
    %v444 = vld [vmem:[%s11] sm:$0x1]
    %v445 = vld [vmem:[#allocation8] sm:$0x1]
    %v446 = vld [vmem:[%s13] sm:$0x1]
    %v448 = vlaneseq
    %v449 = vshrl.u32 %v448, 7
    %v450 = vsub.s32 0, %v449
    %v451 = vrot.slane %v443, %v450
    %vm453 = vcmask 130048
    %v455 = vsel %vm453, %v440, 0
    %457 = vmatprep.subr.mxu0 0.0
    %458 = vmatpush1.msra.mxu0 %v441
    %459 = vmatprep.subr.mxu0 0.0
    %460 = vmatpush1.msra.mxu0 %v442
    %461 = vmatprep.subr.mxu0 0.0
    %462 = vmatpush1.msra.mxu0 0.0
    %463 = vmatprep.subr.mxu0 0.0
    %464 = vmatpush1.msra.mxu0 0.0
    %465 = vmatprep.subr.mxu0 0.0
    %466 = vmatpush1.msra.mxu0 0.0
    %467 = vmatprep.subr.mxu0 0.0
    %468 = vmatpush1.msra.mxu0 0.0
    %469 = vmatprep.subr.mxu0 0.0
    %470 = vmatpush1.msra.mxu0 0.0
    %471 = vmatprep.subr.mxu0 0.0
    %472 = vmatpush1.msra.mxu0 0.0
    %473 = vmatprep.subr.mxu0 0.0
    %474 = vmatpush1.msra.mxu0 0.0
    %475 = vmatprep.subr.mxu0 0.0
    %476 = vmatpush1.msra.mxu0 0.0
    %477 = vmatprep.subr.mxu0 0.0
    %478 = vmatpush1.msra.mxu0 0.0
    %479 = vmatprep.subr.mxu0 0.0
    %480 = vmatpush1.msra.mxu0 0.0
    %481 = vmatprep.subr.mxu0 0.0
    %482 = vmatpush1.msra.mxu0 0.0
    %483 = vmatprep.subr.mxu0 0.0
    %484 = vmatpush1.msra.mxu0 0.0
    %485 = vmatprep.subr.mxu0 0.0
    %486 = vmatpush1.msra.mxu0 0.0
    %487 = vmatprep.subr.mxu0 0.0
    %488 = vmatpush1.msra.mxu0 0.0
    %489 = vmatprep.subr.mxu0 0.0
    %490 = vmatpush1.msra.mxu0 0.0
    %491 = vmatprep.subr.mxu0 0.0
    %492 = vmatpush1.msra.mxu0 0.0
    %493 = vmatprep.subr.mxu0 0.0
    %494 = vmatpush1.msra.mxu0 0.0
    %495 = vmatprep.subr.mxu0 0.0
    %496 = vmatpush1.msra.mxu0 0.0
    %497 = vmatprep.subr.mxu0 0.0
    %498 = vmatpush1.msra.mxu0 0.0
    %499 = vmatprep.subr.mxu0 0.0
    %500 = vmatpush1.msra.mxu0 0.0
    %501 = vmatprep.subr.mxu0 0.0
    %502 = vmatpush1.msra.mxu0 0.0
    %503 = vmatprep.subr.mxu0 0.0
    %504 = vmatpush1.msra.mxu0 0.0
    %505 = vmatprep.subr.mxu0 0.0
    %506 = vmatpush1.msra.mxu0 0.0
    %507 = vmatprep.subr.mxu0 0.0
    %508 = vmatpush1.msra.mxu0 0.0
    %509 = vmatprep.subr.mxu0 0.0
    %510 = vmatpush1.msra.mxu0 0.0
    %511 = vmatprep.subr.mxu0 0.0
    %512 = vmatpush1.msra.mxu0 0.0
    %513 = vmatprep.subr.mxu0 0.0
    %514 = vmatpush1.msra.mxu0 0.0
    %515 = vmatprep.subr.mxu0 0.0
    %516 = vmatpush1.msra.mxu0 0.0
    %517 = vmatprep.subr.mxu0 0.0
    %518 = vmatpush1.msra.mxu0 0.0
    %519 = vmatprep.subr.mxu0 0.0
    %520 = vmatpush1.msra.mxu0 0.0
    %521 = vmatprep.mubr.f32.mxu0 0.0
    %522 = vmatmul.mubr.f32.gmra.mrb[0].mxu0 %v455
    %v523 = vpop.f32.mrb[0].mxu0
    %v524 = vadd.f32 %v451, %v523
    %v525 = vpop.f32.mrb[0].mxu0
    %526 = vdwg.mxu0
    %v527 = vmax.f32 %v524, 0.0
    %v529 = vlaneseq
    %v530 = vshrl.u32 %v529, 7
    %v531 = vsub.s32 0, %v530
    %v532 = vrot.slane %v444, %v531
    %v534 = vmul.f32 %v527, %v532
    %535 = vadd.xlane.f32.xlu0 %v534
    %v536 = vpop.xlane.xlu0 %535
    %v538 = vlaneseq
    %v539 = vshrl.u32 %v538, 7
    %v540 = vsub.s32 0, %v539
    %v541 = vrot.slane %v445, %v540
    %v543 = vadd.f32 %v536, %v541
    %545 = vset.pattern.permute.xlu0 0
    %546 = vperm.xlu0 %545, %v543
    %v547 = vpop.permute.xlu0 %546
    %v550 = vlaneseq
    %v551 = vshrl.u32 %v550, 7
    %v552 = vsub.s32 0, %v551
    %v553 = vrot.slane %v446, %v552
    %v555 = vmul.f32 %v547, %v553
    %v556 = vadd.f32 %v524, %v555
    %557 = vst [vmem:[#allocation14] sm:$0xff] %v556
    // Predicated region
    $region124: #{tpu_custom_call.1} parent=1 // pred_check
      _
    $region125: #{tpu_custom_call.1} parent=1 // pred_check_branch
      %559 = sbr.rel (0) target = $region127
    $region126: #{tpu_custom_call.1} parent=1 // pred_region
      %s561 = ssub.s32 128, 128
      %562 = vsyncadd [#allocation11], %s561
      %s564 = sshll.u32 [#allocation14], 4
      %s565 = int_to_ptr.vmem [resolvable:$true] %s564
      %567 = dma.vmem_to_hbm [thread:$0]  %s565, 128, %s14, [#allocation11]
    $region127: #{tpu_custom_call.1} parent=1 // pred_fallthru
      _
    // Predicated region
    $region128: #{tpu_custom_call.1} parent=1 // pred_check
      _
    $region129: #{tpu_custom_call.1} parent=1 // pred_check_branch
      %569 = sbr.rel (0) target = $region131
    $region130: #{tpu_custom_call.1} parent=1 // pred_region
      %570 = dma.done [#allocation11], 128
    $region131: #{tpu_custom_call.1} parent=1 // pred_fallthru
      _
    %571 = vsyncpa [#allocation10], 1
    %572 = vsyncpa [#allocation13], 1
    %573 = vsyncpa [#allocation11], 1
  %574 = vsyncmov [#allocation4]
  %s575 = vpop.sfrf %574
  %p576 = scmp.eq.s32.totalorder %s575, 0
  %p577 = pneg %p576
  %579 = shalt.err (%p577)
  %s580 = scalar_lea.sflag [#allocation4], 1
  %581 = vsyncmov %s580
  %s582 = vpop.sfrf %581
  %p583 = scmp.eq.s32.totalorder %s582, 0
  %p584 = pneg %p583
  %586 = shalt.err (%p584)

</llo_original>
